<compile_context>
chip_gen: v6e
topology: v6e:2x2x1
jax: 0.10.0
libtpu: 0.0.40
codegen_flags: <defaults>
</compile_context>

<pallas_src>
import jax
import jax.numpy as jnp
from jax import lax
from jax.experimental import pallas as pl
from jax.experimental.pallas import tpu as pltpu


def _round_up(x, m):
    return (x + m - 1) // m * m


def _layer_norm(x, w, b, eps=1e-5):
    mu = jnp.mean(x, axis=-1, keepdims=True)
    xc = x - mu
    var = jnp.mean(xc * xc, axis=-1, keepdims=True)
    return xc * lax.rsqrt(var + eps) * w + b


def _make_kernel(n_heads, seq_len, nb):
    t = seq_len + 1
    t_pad = _round_up(t, 8)
    nbt = nb * t_pad

    def kernel(xy_ref, ct_ref, wemb_ref, bemb_ref,
               wqkv_ref, bqkv_ref, wo_ref, bo_ref,
               ln1w_ref, ln1b_ref, w1_ref, b1_ref, w2_ref, b2_ref,
               ln2w_ref, ln2b_ref, out_ref, z_ref):
        f = ct_ref.shape[-1]
        hd = f // n_heads
        d_in = xy_ref.shape[-1]
        layer = pl.program_id(1)

        # ---- layer 0 of this batch block: embed values, prepend context
        # token, zero-pad the sequence to t_pad rows, stash in VMEM scratch.
        @pl.when(layer == 0)
        def _():
            xy = xy_ref[...].reshape(nb * seq_len, d_in).astype(jnp.bfloat16)
            emb = jnp.dot(xy, wemb_ref[...],
                          preferred_element_type=jnp.float32) + bemb_ref[...]
            emb = emb.reshape(nb, seq_len, f)
            ctok = jnp.broadcast_to(ct_ref[...].reshape(1, 1, f), (nb, 1, f))
            parts = [ctok, emb]
            if t_pad > t:
                parts.append(jnp.zeros((nb, t_pad - t, f), jnp.float32))
            z_ref[...] = jnp.concatenate(parts, axis=1).reshape(nbt, f)

        zf = z_ref[...]                      # (nbt, f) f32 residual stream

        # additive attention mask: key column 0 (context token, mask[:,0]=True
        # in the PyTorch module) and padded key columns are disallowed.
        col = lax.broadcasted_iota(jnp.int32, (t_pad, t_pad), 1)
        add_mask = jnp.where((col == 0) | (col >= t), -1e30, 0.0)

        # ---- fused QKV projection (1/sqrt(hd) pre-folded into Q weights) ----
        qkv = jnp.dot(zf.astype(jnp.bfloat16), wqkv_ref[0],
                      preferred_element_type=jnp.float32) + bqkv_ref[0]
        qkv = qkv.reshape(nb, t_pad, 3 * f).astype(jnp.bfloat16)

        # ---- head-batched attention: batch axis = (head, batch_block) ----
        q = jnp.concatenate(
            [qkv[:, :, h * hd:(h + 1) * hd] for h in range(n_heads)], axis=0)
        k = jnp.concatenate(
            [qkv[:, :, f + h * hd:f + (h + 1) * hd] for h in range(n_heads)],
            axis=0)
        v = jnp.concatenate(
            [qkv[:, :, 2 * f + h * hd:2 * f + (h + 1) * hd]
             for h in range(n_heads)], axis=0)

        s = jnp.einsum('bqd,bkd->bqk', q, k,
                       preferred_element_type=jnp.float32)
        s = s + add_mask
        s = s - jnp.max(s, axis=-1, keepdims=True)
        p = jnp.exp(s)
        p = p * pl.reciprocal(jnp.sum(p, axis=-1, keepdims=True), approx=True)
        ctx = jnp.einsum('bqk,bkd->bqd', p.astype(jnp.bfloat16), v,
                         preferred_element_type=jnp.float32)
        ctx = ctx.reshape(n_heads, nb, t_pad, hd)
        ctx = jnp.concatenate([ctx[h] for h in range(n_heads)], axis=-1)
        ctx = ctx.reshape(nbt, f)

        # ---- output projection + residual + LayerNorm (post-norm) ----
        attn = jnp.dot(ctx.astype(jnp.bfloat16), wo_ref[0],
                       preferred_element_type=jnp.float32) + bo_ref[0]
        zf = _layer_norm(zf + attn, ln1w_ref[0], ln1b_ref[0])

        # ---- feed-forward (ReLU), dropout = 0 ----
        h1 = jnp.dot(zf.astype(jnp.bfloat16), w1_ref[0],
                     preferred_element_type=jnp.float32) + b1_ref[0]
        h1 = jnp.maximum(h1, 0.0)
        ff = jnp.dot(h1.astype(jnp.bfloat16), w2_ref[0],
                     preferred_element_type=jnp.float32) + b2_ref[0]
        zf = _layer_norm(zf + ff, ln2w_ref[0], ln2b_ref[0])

        z_ref[...] = zf
        # context-token output (sequence position 0 of every batch element)
        out_ref[...] = zf.reshape(nb, t_pad, f)[:, 0, :].reshape(1, nb, f)

    return kernel


_LAYER_PARAMS = ("w_qkv", "b_qkv", "w_o", "b_o", "ln1_w", "ln1_b",
                 "w1", "b1", "w2", "b2", "ln2_w", "ln2_b")
_BF16_WEIGHTS = ("w_emb", "w_qkv", "w_o", "w1", "w2")


def _choose_block_batch(b, t_pad, target_rows=256):
    """nb*t_pad ~ MXU row width, but keep >=2 grid steps for v7x megacore."""
    nb = max(1, target_rows // t_pad)
    if b >= 2:
        nb = min(nb, max(1, b // 2))
    else:
        nb = 1
    return nb


def _vmem_limit_bytes():
    try:
        cap = int(pltpu.get_tpu_info().vmem_capacity_bytes)
    except Exception:
        return 32 * 1024 * 1024
    # ~3/4 of physical VMEM: ~48 MiB on v7x (64 MiB), ~96 MiB on v5e/v6e.
    return min(cap * 3 // 4, 100 * 1024 * 1024)


def transformer_context_forward(params, x_c, y_c, n_heads):
    xy = x_c if y_c is None else jnp.concatenate([x_c, y_c], axis=-1)
    b, seq, d_in = xy.shape
    nl, f, f3 = params["w_qkv"].shape
    assert f3 == 3 * f and f % n_heads == 0
    hd = f // n_heads
    t_pad = _round_up(seq + 1, 8)

    nb = _choose_block_batch(b, t_pad)
    b_pad = _round_up(b, nb)
    grid_b = b_pad // nb
    if b_pad > b:
        xy = jnp.concatenate(
            [xy, jnp.zeros((b_pad - b, seq, d_in), xy.dtype)], axis=0)

    # Fold 1/sqrt(hd) into the Q columns of the packed QKV projection and
    # cast matmul weights to bf16 (accumulation stays f32 in the kernel).
    scale = 1.0 / float(hd) ** 0.5
    qkv_col_scale = jnp.concatenate(
        [jnp.full((f,), scale, jnp.float32), jnp.ones((2 * f,), jnp.float32)])
    prepped = dict(params)
    prepped["w_qkv"] = params["w_qkv"] * qkv_col_scale
    prepped["b_qkv"] = params["b_qkv"] * qkv_col_scale
    for name in _BF16_WEIGHTS:
        prepped[name] = prepped[name].astype(jnp.bfloat16)

    kernel = _make_kernel(n_heads, seq, nb)

    in_specs = [pl.BlockSpec((nb, seq, d_in), lambda i, l: (i, 0, 0))]
    operands = [xy]
    for name in ("c_token", "w_emb", "b_emb"):          # shared across layers
        arr = prepped[name]
        in_specs.append(pl.BlockSpec(
            arr.shape, lambda i, l, _n=arr.ndim: (0,) * _n))
        operands.append(arr)
    for name in _LAYER_PARAMS:                          # blocked per layer
        arr = prepped[name]
        in_specs.append(pl.BlockSpec(
            (1,) + arr.shape[1:],
            lambda i, l, _n=arr.ndim - 1: (l,) + (0,) * _n))
        operands.append(arr)

    out = pl.pallas_call(
        kernel,
        out_shape=jax.ShapeDtypeStruct((grid_b, nb, f), jnp.float32),
        grid_spec=pltpu.PrefetchScalarGridSpec(
            num_scalar_prefetch=0,
            grid=(grid_b, nl),
            in_specs=in_specs,
            out_specs=pl.BlockSpec((1, nb, f), lambda i, l: (i, 0, 0)),
            scratch_shapes=[pltpu.VMEM((nb * t_pad, f), jnp.float32)],
        ),
        compiler_params=pltpu.CompilerParams(
            dimension_semantics=("parallel", "arbitrary"),
            vmem_limit_bytes=_vmem_limit_bytes(),
        ),
    )(*operands)

    out = out.reshape(b_pad, f)[:b]
    # z_dim == n_features in this configuration -> no z_encoder branch
    # (same as the PyTorch module when z_dim is None).
    return out


def init_params(key, x_dim, y_dim, n_features, n_hidden, n_layers):
    f, hid, nl = n_features, n_hidden, n_layers
    d_in = x_dim + y_dim
    ks = iter(jax.random.split(key, 8))

    def wmat(shape, fan_in):
        return (jax.random.normal(next(ks), shape, jnp.float32)
                / float(fan_in) ** 0.5)

    # Linear weights stored pre-transposed ([in, out]) so the kernel computes
    # x @ W + b.  w_qkv packs [Wq^T | Wk^T | Wv^T] along the output dim; within
    # each F-wide block, head h owns columns [h*hd, (h+1)*hd), matching
    # PyTorch's contiguous in_proj / head-split layout.  w_o is out_proj^T.
    return {
        "w_emb": wmat((d_in, f), d_in),
        "b_emb": jnp.zeros((1, f), jnp.float32),
        "c_token": jax.random.normal(next(ks), (1, f), jnp.float32),
        "w_qkv": wmat((nl, f, 3 * f), f),
        "b_qkv": jnp.zeros((nl, 1, 3 * f), jnp.float32),
        "w_o": wmat((nl, f, f), f),
        "b_o": jnp.zeros((nl, 1, f), jnp.float32),
        "ln1_w": jnp.ones((nl, 1, f), jnp.float32),
        "ln1_b": jnp.zeros((nl, 1, f), jnp.float32),
        "w1": wmat((nl, f, hid), f),
        "b1": jnp.zeros((nl, 1, hid), jnp.float32),
        "w2": wmat((nl, hid, f), hid),
        "b2": jnp.zeros((nl, 1, f), jnp.float32),
        "ln2_w": jnp.ones((nl, 1, f), jnp.float32),
        "ln2_b": jnp.zeros((nl, 1, f), jnp.float32),
    }


def transformer_context_reference(params, x_c, y_c, n_heads):
    """Pure-JAX f32 reference mirroring the PyTorch forward (verification)."""
    xy = x_c if y_c is None else jnp.concatenate([x_c, y_c], axis=-1)
    b, s, _ = xy.shape
    nl, f, _ = params["w_qkv"].shape
    hd = f // n_heads
    emb = xy @ params["w_emb"] + params["b_emb"]
    ctok = jnp.broadcast_to(params["c_token"][None, :, :], (b, 1, f))
    z = jnp.concatenate([ctok, emb], axis=1)
    t = s + 1
    mask = jnp.where(jnp.arange(t) == 0, -1e30, 0.0)   # key axis

    def ln(x, w, b_):
        mu = jnp.mean(x, -1, keepdims=True)
        var = jnp.mean((x - mu) ** 2, -1, keepdims=True)
        return (x - mu) / jnp.sqrt(var + 1e-5) * w + b_

    for l in range(nl):
        qkv = z @ params["w_qkv"][l] + params["b_qkv"][l]
        heads = []
        for h in range(n_heads):
            qh = qkv[..., h * hd:(h + 1) * hd]
            kh = qkv[..., f + h * hd:f + (h + 1) * hd]
            vh = qkv[..., 2 * f + h * hd:2 * f + (h + 1) * hd]
            sc = jnp.einsum('bqd,bkd->bqk', qh, kh) / hd ** 0.5 + mask
            p = jax.nn.softmax(sc, axis=-1)
            heads.append(jnp.einsum('bqk,bkd->bqd', p, vh))
        attn = jnp.concatenate(heads, -1) @ params["w_o"][l] + params["b_o"][l]
        z = ln(z + attn, params["ln1_w"][l], params["ln1_b"][l])
        h1 = jax.nn.relu(z @ params["w1"][l] + params["b1"][l])
        ff = h1 @ params["w2"][l] + params["b2"][l]
        z = ln(z + ff, params["ln2_w"][l], params["ln2_b"][l])
    return z[:, 0, :]


if __name__ == "__main__":
    x_dim, y_dim = 4, 4
    n_features, n_heads, n_hidden, n_layers = 32, 4, 64, 2
    batch, seq = 2, 8

    root = jax.random.PRNGKey(0)
    k_param, k_x, k_y = jax.random.split(root, 3)
    params = init_params(k_param, x_dim, y_dim, n_features, n_hidden, n_layers)
    x_c = jax.random.normal(k_x, (batch, seq, x_dim), jnp.float32)
    y_c = jax.random.normal(k_y, (batch, seq, y_dim), jnp.float32)

    z = transformer_context_forward(params, x_c, y_c, n_heads)
    z = jax.block_until_ready(z)
    assert z.shape == (batch, n_features), z.shape
    assert bool(jnp.all(jnp.isfinite(z)))

    z_ref = transformer_context_reference(params, x_c, y_c, n_heads)
    # bf16 matmuls (f32 accumulation) + approx reciprocal vs. an exact f32
    # reference -> allow a few % of slack.
    err = float(jnp.max(jnp.abs(z - z_ref)))
    assert bool(jnp.allclose(z, z_ref, atol=5e-2, rtol=5e-2)), err
    print("KERNEL_OK")
</pallas_src>

<mosaic_0001>
module attributes {stable_mosaic.version = 11 : i64} {
  func.func @kernel(%arg0: i32, %arg1: i32, %arg2: memref<1x8x8xf32, #tpu.memory_space<vmem>>, %arg3: memref<1x32xf32, #tpu.memory_space<vmem>>, %arg4: memref<8x32xbf16, #tpu.memory_space<vmem>>, %arg5: memref<1x32xf32, #tpu.memory_space<vmem>>, %arg6: memref<1x32x96xbf16, #tpu.memory_space<vmem>>, %arg7: memref<1x1x96xf32, #tpu.memory_space<vmem>>, %arg8: memref<1x32x32xbf16, #tpu.memory_space<vmem>>, %arg9: memref<1x1x32xf32, #tpu.memory_space<vmem>>, %arg10: memref<1x1x32xf32, #tpu.memory_space<vmem>>, %arg11: memref<1x1x32xf32, #tpu.memory_space<vmem>>, %arg12: memref<1x32x64xbf16, #tpu.memory_space<vmem>>, %arg13: memref<1x1x64xf32, #tpu.memory_space<vmem>>, %arg14: memref<1x64x32xbf16, #tpu.memory_space<vmem>>, %arg15: memref<1x1x32xf32, #tpu.memory_space<vmem>>, %arg16: memref<1x1x32xf32, #tpu.memory_space<vmem>>, %arg17: memref<1x1x32xf32, #tpu.memory_space<vmem>>, %arg18: memref<1x1x32xf32, #tpu.memory_space<vmem>>, %arg19: memref<16x32xf32, #tpu.memory_space<vmem>>) attributes {dimension_semantics = [#tpu.dimension_semantics<parallel>, #tpu.dimension_semantics<arbitrary>], iteration_bounds = array<i64: 2, 2>, scalar_prefetch = 0 : i64, scratch_operands = 1 : i64, tpu.core_type = #tpu.core_type<tc>, window_params = [{transform_indices = @transform_0, window_bounds = array<i64: 1, 8, 8>}, {pipeline_mode = #tpu.pipeline_mode<synchronous>, transform_indices = @transform_1, window_bounds = array<i64: 1, 32>}, {pipeline_mode = #tpu.pipeline_mode<synchronous>, transform_indices = @transform_2, window_bounds = array<i64: 8, 32>}, {pipeline_mode = #tpu.pipeline_mode<synchronous>, transform_indices = @transform_3, window_bounds = array<i64: 1, 32>}, {transform_indices = @transform_4, window_bounds = array<i64: 1, 32, 96>}, {transform_indices = @transform_5, window_bounds = array<i64: 1, 1, 96>}, {transform_indices = @transform_6, window_bounds = array<i64: 1, 32, 32>}, {transform_indices = @transform_7, window_bounds = array<i64: 1, 1, 32>}, {transform_indices = @transform_8, window_bounds = array<i64: 1, 1, 32>}, {transform_indices = @transform_9, window_bounds = array<i64: 1, 1, 32>}, {transform_indices = @transform_10, window_bounds = array<i64: 1, 32, 64>}, {transform_indices = @transform_11, window_bounds = array<i64: 1, 1, 64>}, {transform_indices = @transform_12, window_bounds = array<i64: 1, 64, 32>}, {transform_indices = @transform_13, window_bounds = array<i64: 1, 1, 32>}, {transform_indices = @transform_14, window_bounds = array<i64: 1, 1, 32>}, {transform_indices = @transform_15, window_bounds = array<i64: 1, 1, 32>}, {transform_indices = @transform_16, window_bounds = array<i64: 1, 1, 32>}]} {
    %c0_i32 = arith.constant 0 : i32
    %0 = arith.cmpi eq, %arg1, %c0_i32 : i32
    %1 = arith.extui %0 : i1 to i32
    %c0_i32_0 = arith.constant 0 : i32
    %2 = arith.cmpi ne, %1, %c0_i32_0 : i32
    scf.if %2 {
      %c0_64 = arith.constant 0 : index
      %c0_65 = arith.constant 0 : index
      %c0_66 = arith.constant 0 : index
      %147 = vector.load %arg2[%c0_64, %c0_65, %c0_66] : memref<1x8x8xf32, #tpu.memory_space<vmem>>, vector<1x8x8xf32>
      %148 = vector.shape_cast %147 : vector<1x8x8xf32> to vector<8x8xf32>
      %149 = arith.truncf %148 : vector<8x8xf32> to vector<8x8xbf16>
      %c0_67 = arith.constant 0 : index
      %c0_68 = arith.constant 0 : index
      %150 = vector.load %arg4[%c0_67, %c0_68] : memref<8x32xbf16, #tpu.memory_space<vmem>>, vector<8x32xbf16>
      %cst_69 = arith.constant dense<0.000000e+00> : vector<8x32xf32>
      %151 = tpu.matmul %149, %150, %cst_69 {dimension_numbers = #tpu.dot_dimension_numbers<[1], [0], [0], [1], [0, 0, 1, 1], [], []>} : vector<8x8xbf16>, vector<8x32xbf16>, vector<8x32xf32> -> vector<8x32xf32>
      %c0_70 = arith.constant 0 : index
      %c0_71 = arith.constant 0 : index
      %152 = vector.load %arg5[%c0_70, %c0_71] : memref<1x32xf32, #tpu.memory_space<vmem>>, vector<1x32xf32>
      %153 = vector.broadcast %152 : vector<1x32xf32> to vector<8x32xf32>
      %154 = arith.addf %151, %153 : vector<8x32xf32>
      %155 = vector.shape_cast %154 : vector<8x32xf32> to vector<1x8x32xf32>
      %c0_72 = arith.constant 0 : index
      %c0_73 = arith.constant 0 : index
      %156 = vector.load %arg3[%c0_72, %c0_73] : memref<1x32xf32, #tpu.memory_space<vmem>>, vector<1x32xf32>
      %157 = vector.shape_cast %156 : vector<1x32xf32> to vector<1x1x32xf32>
      %cst_74 = arith.constant 0.000000e+00 : f32
      %158 = vector.broadcast %cst_74 : f32 to vector<1x7x32xf32>
      %159 = tpu.concatenate %157, %155, %158 in 1 : vector<1x1x32xf32>, vector<1x8x32xf32>, vector<1x7x32xf32> -> vector<1x16x32xf32>
      %160 = vector.shape_cast %159 : vector<1x16x32xf32> to vector<16x32xf32>
      %c0_75 = arith.constant 0 : index
      %c0_76 = arith.constant 0 : index
      %161 = vector.load %arg19[%c0_75, %c0_76] : memref<16x32xf32, #tpu.memory_space<vmem>>, vector<16x32xf32>
      tpu.vector_store %arg19[%c0_75, %c0_76], %160 {strides = array<i32>} : memref<16x32xf32, #tpu.memory_space<vmem>>, vector<16x32xf32>,
    } else {
    }
    %c0 = arith.constant 0 : index
    %c0_1 = arith.constant 0 : index
    %3 = vector.load %arg19[%c0, %c0_1] : memref<16x32xf32, #tpu.memory_space<vmem>>, vector<16x32xf32>
    %4 = tpu.iota {dimensions = array<i32: 1>} : vector<16x16xi32>
    %c0_i32_2 = arith.constant 0 : i32
    %5 = vector.broadcast %c0_i32_2 : i32 to vector<16x16xi32>
    %6 = arith.cmpi eq, %4, %5 : vector<16x16xi32>
    %c9_i32 = arith.constant 9 : i32
    %7 = vector.broadcast %c9_i32 : i32 to vector<16x16xi32>
    %8 = arith.cmpi sge, %4, %7 : vector<16x16xi32>
    %9 = arith.ori %6, %8 : vector<16x16xi1>
    %cst = arith.constant -1.000000e+30 : f32
    %cst_3 = arith.constant 0.000000e+00 : f32
    %10 = vector.broadcast %cst : f32 to vector<16x16xf32>
    %11 = vector.broadcast %cst_3 : f32 to vector<16x16xf32>
    %12 = arith.select %9, %10, %11 : vector<16x16xi1>, vector<16x16xf32>
    %13 = arith.truncf %3 : vector<16x32xf32> to vector<16x32xbf16>
    %c0_4 = arith.constant 0 : index
    %c0_5 = arith.constant 0 : index
    %c0_6 = arith.constant 0 : index
    %14 = vector.load %arg6[%c0_4, %c0_5, %c0_6] : memref<1x32x96xbf16, #tpu.memory_space<vmem>>, vector<1x32x96xbf16>
    %15 = vector.shape_cast %14 : vector<1x32x96xbf16> to vector<32x96xbf16>
    %cst_7 = arith.constant dense<0.000000e+00> : vector<16x96xf32>
    %16 = tpu.matmul %13, %15, %cst_7 {dimension_numbers = #tpu.dot_dimension_numbers<[1], [0], [0], [1], [0, 0, 1, 1], [], []>} : vector<16x32xbf16>, vector<32x96xbf16>, vector<16x96xf32> -> vector<16x96xf32>
    %c0_8 = arith.constant 0 : index
    %c0_9 = arith.constant 0 : index
    %c0_10 = arith.constant 0 : index
    %17 = vector.load %arg7[%c0_8, %c0_9, %c0_10] : memref<1x1x96xf32, #tpu.memory_space<vmem>>, vector<1x1x96xf32>
    %18 = vector.shape_cast %17 : vector<1x1x96xf32> to vector<1x96xf32>
    %19 = vector.broadcast %18 : vector<1x96xf32> to vector<16x96xf32>
    %20 = arith.addf %16, %19 : vector<16x96xf32>
    %21 = vector.shape_cast %20 : vector<16x96xf32> to vector<1x16x96xf32>
    %22 = arith.truncf %21 : vector<1x16x96xf32> to vector<1x16x96xbf16>
    %23 = vector.extract_strided_slice %22 {offsets = [0, 0, 0], sizes = [1, 16, 8], strides = [1, 1, 1]} : vector<1x16x96xbf16> to vector<1x16x8xbf16>
    %24 = vector.extract_strided_slice %22 {offsets = [0, 0, 8], sizes = [1, 16, 8], strides = [1, 1, 1]} : vector<1x16x96xbf16> to vector<1x16x8xbf16>
    %25 = vector.extract_strided_slice %22 {offsets = [0, 0, 16], sizes = [1, 16, 8], strides = [1, 1, 1]} : vector<1x16x96xbf16> to vector<1x16x8xbf16>
    %26 = vector.extract_strided_slice %22 {offsets = [0, 0, 24], sizes = [1, 16, 8], strides = [1, 1, 1]} : vector<1x16x96xbf16> to vector<1x16x8xbf16>
    %27 = tpu.concatenate %23, %24, %25, %26 in 0 : vector<1x16x8xbf16>, vector<1x16x8xbf16>, vector<1x16x8xbf16>, vector<1x16x8xbf16> -> vector<4x16x8xbf16>
    %28 = vector.extract_strided_slice %22 {offsets = [0, 0, 32], sizes = [1, 16, 8], strides = [1, 1, 1]} : vector<1x16x96xbf16> to vector<1x16x8xbf16>
    %29 = vector.extract_strided_slice %22 {offsets = [0, 0, 40], sizes = [1, 16, 8], strides = [1, 1, 1]} : vector<1x16x96xbf16> to vector<1x16x8xbf16>
    %30 = vector.extract_strided_slice %22 {offsets = [0, 0, 48], sizes = [1, 16, 8], strides = [1, 1, 1]} : vector<1x16x96xbf16> to vector<1x16x8xbf16>
    %31 = vector.extract_strided_slice %22 {offsets = [0, 0, 56], sizes = [1, 16, 8], strides = [1, 1, 1]} : vector<1x16x96xbf16> to vector<1x16x8xbf16>
    %32 = tpu.concatenate %28, %29, %30, %31 in 0 : vector<1x16x8xbf16>, vector<1x16x8xbf16>, vector<1x16x8xbf16>, vector<1x16x8xbf16> -> vector<4x16x8xbf16>
    %33 = vector.extract_strided_slice %22 {offsets = [0, 0, 64], sizes = [1, 16, 8], strides = [1, 1, 1]} : vector<1x16x96xbf16> to vector<1x16x8xbf16>
    %34 = vector.extract_strided_slice %22 {offsets = [0, 0, 72], sizes = [1, 16, 8], strides = [1, 1, 1]} : vector<1x16x96xbf16> to vector<1x16x8xbf16>
    %35 = vector.extract_strided_slice %22 {offsets = [0, 0, 80], sizes = [1, 16, 8], strides = [1, 1, 1]} : vector<1x16x96xbf16> to vector<1x16x8xbf16>
    %36 = vector.extract_strided_slice %22 {offsets = [0, 0, 88], sizes = [1, 16, 8], strides = [1, 1, 1]} : vector<1x16x96xbf16> to vector<1x16x8xbf16>
    %37 = tpu.concatenate %33, %34, %35, %36 in 0 : vector<1x16x8xbf16>, vector<1x16x8xbf16>, vector<1x16x8xbf16>, vector<1x16x8xbf16> -> vector<4x16x8xbf16>
    "tpu.trace_start"() <{level = 10 : i32, message = "bqd,bkd->bqk"}> : () -> ()
    %cst_11 = arith.constant dense<0.000000e+00> : vector<4x16x16xf32>
    %38 = tpu.matmul %27, %32, %cst_11 {dimension_numbers = #tpu.dot_dimension_numbers<[2], [2], [1], [1], [0, 0, 0, 1, 1, 1], [0], [0]>} : vector<4x16x8xbf16>, vector<4x16x8xbf16>, vector<4x16x16xf32> -> vector<4x16x16xf32>
    "tpu.trace_stop"() : () -> ()
    %39 = vector.shape_cast %12 : vector<16x16xf32> to vector<1x16x16xf32>
    %40 = vector.broadcast %39 : vector<1x16x16xf32> to vector<4x16x16xf32>
    %41 = arith.addf %38, %40 : vector<4x16x16xf32>
    %cst_12 = arith.constant dense<0xFF800000> : vector<4x16xf32>
    %42 = vector.multi_reduction <maximumf>, %41, %cst_12 [2] : vector<4x16x16xf32> to vector<4x16xf32>
    %43 = vector.shape_cast %42 : vector<4x16xf32> to vector<4x16x1xf32>
    %44 = vector.broadcast %43 : vector<4x16x1xf32> to vector<4x16x16xf32>
    %45 = arith.subf %41, %44 : vector<4x16x16xf32>
    %46 = math.exp %45 : vector<4x16x16xf32>
    %cst_13 = arith.constant dense<0.000000e+00> : vector<4x16xf32>
    %47 = vector.multi_reduction <add>, %46, %cst_13 [2] : vector<4x16x16xf32> to vector<4x16xf32>
    %48 = vector.shape_cast %47 : vector<4x16xf32> to vector<4x16x1xf32>
    %49 = tpu.reciprocal %48 {approx = true} : vector<4x16x1xf32> -> vector<4x16x1xf32>
    %50 = vector.broadcast %49 : vector<4x16x1xf32> to vector<4x16x16xf32>
    %51 = arith.mulf %46, %50 : vector<4x16x16xf32>
    %52 = arith.truncf %51 : vector<4x16x16xf32> to vector<4x16x16xbf16>
    "tpu.trace_start"() <{level = 10 : i32, message = "bqk,bkd->bqd"}> : () -> ()
    %cst_14 = arith.constant dense<0.000000e+00> : vector<4x16x8xf32>
    %53 = tpu.matmul %52, %37, %cst_14 {dimension_numbers = #tpu.dot_dimension_numbers<[2], [1], [1], [2], [0, 0, 0, 1, 1, 2], [0], [0]>} : vector<4x16x16xbf16>, vector<4x16x8xbf16>, vector<4x16x8xf32> -> vector<4x16x8xf32>
    "tpu.trace_stop"() : () -> ()
    %54 = vector.shape_cast %53 : vector<4x16x8xf32> to vector<4x1x16x8xf32>
    %55 = vector.extract_strided_slice %54 {offsets = [0, 0, 0, 0], sizes = [1, 1, 16, 8], strides = [1, 1, 1, 1]} : vector<4x1x16x8xf32> to vector<1x1x16x8xf32>
    %56 = vector.shape_cast %55 : vector<1x1x16x8xf32> to vector<1x16x8xf32>
    %57 = vector.extract_strided_slice %54 {offsets = [1, 0, 0, 0], sizes = [1, 1, 16, 8], strides = [1, 1, 1, 1]} : vector<4x1x16x8xf32> to vector<1x1x16x8xf32>
    %58 = vector.shape_cast %57 : vector<1x1x16x8xf32> to vector<1x16x8xf32>
    %59 = vector.extract_strided_slice %54 {offsets = [2, 0, 0, 0], sizes = [1, 1, 16, 8], strides = [1, 1, 1, 1]} : vector<4x1x16x8xf32> to vector<1x1x16x8xf32>
    %60 = vector.shape_cast %59 : vector<1x1x16x8xf32> to vector<1x16x8xf32>
    %61 = vector.extract_strided_slice %54 {offsets = [3, 0, 0, 0], sizes = [1, 1, 16, 8], strides = [1, 1, 1, 1]} : vector<4x1x16x8xf32> to vector<1x1x16x8xf32>
    %62 = vector.shape_cast %61 : vector<1x1x16x8xf32> to vector<1x16x8xf32>
    %63 = tpu.concatenate %56, %58, %60, %62 in 2 : vector<1x16x8xf32>, vector<1x16x8xf32>, vector<1x16x8xf32>, vector<1x16x8xf32> -> vector<1x16x32xf32>
    %64 = vector.shape_cast %63 : vector<1x16x32xf32> to vector<16x32xf32>
    %65 = arith.truncf %64 : vector<16x32xf32> to vector<16x32xbf16>
    %c0_15 = arith.constant 0 : index
    %c0_16 = arith.constant 0 : index
    %c0_17 = arith.constant 0 : index
    %66 = vector.load %arg8[%c0_15, %c0_16, %c0_17] : memref<1x32x32xbf16, #tpu.memory_space<vmem>>, vector<1x32x32xbf16>
    %67 = vector.shape_cast %66 : vector<1x32x32xbf16> to vector<32x32xbf16>
    %cst_18 = arith.constant dense<0.000000e+00> : vector<16x32xf32>
    %68 = tpu.matmul %65, %67, %cst_18 {dimension_numbers = #tpu.dot_dimension_numbers<[1], [0], [0], [1], [0, 0, 1, 1], [], []>} : vector<16x32xbf16>, vector<32x32xbf16>, vector<16x32xf32> -> vector<16x32xf32>
    %c0_19 = arith.constant 0 : index
    %c0_20 = arith.constant 0 : index
    %c0_21 = arith.constant 0 : index
    %69 = vector.load %arg9[%c0_19, %c0_20, %c0_21] : memref<1x1x32xf32, #tpu.memory_space<vmem>>, vector<1x1x32xf32>
    %70 = vector.shape_cast %69 : vector<1x1x32xf32> to vector<1x32xf32>
    %71 = vector.broadcast %70 : vector<1x32xf32> to vector<16x32xf32>
    %72 = arith.addf %68, %71 : vector<16x32xf32>
    %73 = arith.addf %3, %72 : vector<16x32xf32>
    %c0_22 = arith.constant 0 : index
    %c0_23 = arith.constant 0 : index
    %c0_24 = arith.constant 0 : index
    %74 = vector.load %arg10[%c0_22, %c0_23, %c0_24] : memref<1x1x32xf32, #tpu.memory_space<vmem>>, vector<1x1x32xf32>
    %75 = vector.shape_cast %74 : vector<1x1x32xf32> to vector<1x32xf32>
    %c0_25 = arith.constant 0 : index
    %c0_26 = arith.constant 0 : index
    %c0_27 = arith.constant 0 : index
    %76 = vector.load %arg11[%c0_25, %c0_26, %c0_27] : memref<1x1x32xf32, #tpu.memory_space<vmem>>, vector<1x1x32xf32>
    %77 = vector.shape_cast %76 : vector<1x1x32xf32> to vector<1x32xf32>
    %cst_28 = arith.constant dense<0.000000e+00> : vector<16xf32>
    %78 = vector.multi_reduction <add>, %73, %cst_28 [1] : vector<16x32xf32> to vector<16xf32>
    %79 = vector.shape_cast %78 : vector<16xf32> to vector<16x1xf32>
    %cst_29 = arith.constant 3.200000e+01 : f32
    %80 = vector.broadcast %cst_29 : f32 to vector<16x1xf32>
    %81 = arith.divf %79, %80 : vector<16x1xf32>
    %82 = vector.broadcast %81 : vector<16x1xf32> to vector<16x32xf32>
    %83 = arith.subf %73, %82 : vector<16x32xf32>
    %84 = arith.mulf %83, %83 : vector<16x32xf32>
    %cst_30 = arith.constant dense<0.000000e+00> : vector<16xf32>
    %85 = vector.multi_reduction <add>, %84, %cst_30 [1] : vector<16x32xf32> to vector<16xf32>
    %86 = vector.shape_cast %85 : vector<16xf32> to vector<16x1xf32>
    %cst_31 = arith.constant 3.200000e+01 : f32
    %87 = vector.broadcast %cst_31 : f32 to vector<16x1xf32>
    %88 = arith.divf %86, %87 : vector<16x1xf32>
    %cst_32 = arith.constant 9.99999974E-6 : f32
    %89 = vector.broadcast %cst_32 : f32 to vector<16x1xf32>
    %90 = arith.addf %88, %89 : vector<16x1xf32>
    %91 = math.rsqrt %90 : vector<16x1xf32>
    %92 = vector.broadcast %91 : vector<16x1xf32> to vector<16x32xf32>
    %93 = arith.mulf %83, %92 : vector<16x32xf32>
    %94 = vector.broadcast %75 : vector<1x32xf32> to vector<16x32xf32>
    %95 = arith.mulf %93, %94 : vector<16x32xf32>
    %96 = vector.broadcast %77 : vector<1x32xf32> to vector<16x32xf32>
    %97 = arith.addf %95, %96 : vector<16x32xf32>
    %98 = arith.truncf %97 : vector<16x32xf32> to vector<16x32xbf16>
    %c0_33 = arith.constant 0 : index
    %c0_34 = arith.constant 0 : index
    %c0_35 = arith.constant 0 : index
    %99 = vector.load %arg12[%c0_33, %c0_34, %c0_35] : memref<1x32x64xbf16, #tpu.memory_space<vmem>>, vector<1x32x64xbf16>
    %100 = vector.shape_cast %99 : vector<1x32x64xbf16> to vector<32x64xbf16>
    %cst_36 = arith.constant dense<0.000000e+00> : vector<16x64xf32>
    %101 = tpu.matmul %98, %100, %cst_36 {dimension_numbers = #tpu.dot_dimension_numbers<[1], [0], [0], [1], [0, 0, 1, 1], [], []>} : vector<16x32xbf16>, vector<32x64xbf16>, vector<16x64xf32> -> vector<16x64xf32>
    %c0_37 = arith.constant 0 : index
    %c0_38 = arith.constant 0 : index
    %c0_39 = arith.constant 0 : index
    %102 = vector.load %arg13[%c0_37, %c0_38, %c0_39] : memref<1x1x64xf32, #tpu.memory_space<vmem>>, vector<1x1x64xf32>
    %103 = vector.shape_cast %102 : vector<1x1x64xf32> to vector<1x64xf32>
    %104 = vector.broadcast %103 : vector<1x64xf32> to vector<16x64xf32>
    %105 = arith.addf %101, %104 : vector<16x64xf32>
    %cst_40 = arith.constant 0.000000e+00 : f32
    %106 = vector.broadcast %cst_40 : f32 to vector<16x64xf32>
    %107 = arith.maximumf %105, %106 : vector<16x64xf32>
    %108 = arith.truncf %107 : vector<16x64xf32> to vector<16x64xbf16>
    %c0_41 = arith.constant 0 : index
    %c0_42 = arith.constant 0 : index
    %c0_43 = arith.constant 0 : index
    %109 = vector.load %arg14[%c0_41, %c0_42, %c0_43] : memref<1x64x32xbf16, #tpu.memory_space<vmem>>, vector<1x64x32xbf16>
    %110 = vector.shape_cast %109 : vector<1x64x32xbf16> to vector<64x32xbf16>
    %cst_44 = arith.constant dense<0.000000e+00> : vector<16x32xf32>
    %111 = tpu.matmul %108, %110, %cst_44 {dimension_numbers = #tpu.dot_dimension_numbers<[1], [0], [0], [1], [0, 0, 1, 1], [], []>} : vector<16x64xbf16>, vector<64x32xbf16>, vector<16x32xf32> -> vector<16x32xf32>
    %c0_45 = arith.constant 0 : index
    %c0_46 = arith.constant 0 : index
    %c0_47 = arith.constant 0 : index
    %112 = vector.load %arg15[%c0_45, %c0_46, %c0_47] : memref<1x1x32xf32, #tpu.memory_space<vmem>>, vector<1x1x32xf32>
    %113 = vector.shape_cast %112 : vector<1x1x32xf32> to vector<1x32xf32>
    %114 = vector.broadcast %113 : vector<1x32xf32> to vector<16x32xf32>
    %115 = arith.addf %111, %114 : vector<16x32xf32>
    %116 = arith.addf %97, %115 : vector<16x32xf32>
    %c0_48 = arith.constant 0 : index
    %c0_49 = arith.constant 0 : index
    %c0_50 = arith.constant 0 : index
    %117 = vector.load %arg16[%c0_48, %c0_49, %c0_50] : memref<1x1x32xf32, #tpu.memory_space<vmem>>, vector<1x1x32xf32>
    %118 = vector.shape_cast %117 : vector<1x1x32xf32> to vector<1x32xf32>
    %c0_51 = arith.constant 0 : index
    %c0_52 = arith.constant 0 : index
    %c0_53 = arith.constant 0 : index
    %119 = vector.load %arg17[%c0_51, %c0_52, %c0_53] : memref<1x1x32xf32, #tpu.memory_space<vmem>>, vector<1x1x32xf32>
    %120 = vector.shape_cast %119 : vector<1x1x32xf32> to vector<1x32xf32>
    %cst_54 = arith.constant dense<0.000000e+00> : vector<16xf32>
    %121 = vector.multi_reduction <add>, %116, %cst_54 [1] : vector<16x32xf32> to vector<16xf32>
    %122 = vector.shape_cast %121 : vector<16xf32> to vector<16x1xf32>
    %cst_55 = arith.constant 3.200000e+01 : f32
    %123 = vector.broadcast %cst_55 : f32 to vector<16x1xf32>
    %124 = arith.divf %122, %123 : vector<16x1xf32>
    %125 = vector.broadcast %124 : vector<16x1xf32> to vector<16x32xf32>
    %126 = arith.subf %116, %125 : vector<16x32xf32>
    %127 = arith.mulf %126, %126 : vector<16x32xf32>
    %cst_56 = arith.constant dense<0.000000e+00> : vector<16xf32>
    %128 = vector.multi_reduction <add>, %127, %cst_56 [1] : vector<16x32xf32> to vector<16xf32>
    %129 = vector.shape_cast %128 : vector<16xf32> to vector<16x1xf32>
    %cst_57 = arith.constant 3.200000e+01 : f32
    %130 = vector.broadcast %cst_57 : f32 to vector<16x1xf32>
    %131 = arith.divf %129, %130 : vector<16x1xf32>
    %cst_58 = arith.constant 9.99999974E-6 : f32
    %132 = vector.broadcast %cst_58 : f32 to vector<16x1xf32>
    %133 = arith.addf %131, %132 : vector<16x1xf32>
    %134 = math.rsqrt %133 : vector<16x1xf32>
    %135 = vector.broadcast %134 : vector<16x1xf32> to vector<16x32xf32>
    %136 = arith.mulf %126, %135 : vector<16x32xf32>
    %137 = vector.broadcast %118 : vector<1x32xf32> to vector<16x32xf32>
    %138 = arith.mulf %136, %137 : vector<16x32xf32>
    %139 = vector.broadcast %120 : vector<1x32xf32> to vector<16x32xf32>
    %140 = arith.addf %138, %139 : vector<16x32xf32>
    %c0_59 = arith.constant 0 : index
    %c0_60 = arith.constant 0 : index
    %141 = vector.load %arg19[%c0_59, %c0_60] : memref<16x32xf32, #tpu.memory_space<vmem>>, vector<16x32xf32>
    tpu.vector_store %arg19[%c0_59, %c0_60], %140 {strides = array<i32>} : memref<16x32xf32, #tpu.memory_space<vmem>>, vector<16x32xf32>,
    %142 = vector.shape_cast %140 : vector<16x32xf32> to vector<1x16x32xf32>
    %143 = vector.extract_strided_slice %142 {offsets = [0, 0, 0], sizes = [1, 1, 32], strides = [1, 1, 1]} : vector<1x16x32xf32> to vector<1x1x32xf32>
    %144 = vector.shape_cast %143 : vector<1x1x32xf32> to vector<1x32xf32>
    %145 = vector.shape_cast %144 : vector<1x32xf32> to vector<1x1x32xf32>
    %c0_61 = arith.constant 0 : index
    %c0_62 = arith.constant 0 : index
    %c0_63 = arith.constant 0 : index
    %146 = vector.load %arg18[%c0_61, %c0_62, %c0_63] : memref<1x1x32xf32, #tpu.memory_space<vmem>>, vector<1x1x32xf32>
    tpu.vector_store %arg18[%c0_61, %c0_62, %c0_63], %145 {strides = array<i32>} : memref<1x1x32xf32, #tpu.memory_space<vmem>>, vector<1x1x32xf32>,
    return
  }
  func.func @transform_0(%arg0: i32, %arg1: i32) -> (i32, i32, i32) {
    %c0_i32 = arith.constant 0 : i32
    %c0_i32_0 = arith.constant 0 : i32
    %c0_i32_1 = arith.constant 0 : i32
    return %arg0, %c0_i32, %c0_i32_0 : i32, i32, i32
  }
  func.func @transform_1(%arg0: i32, %arg1: i32) -> (i32, i32) {
    %c0_i32 = arith.constant 0 : i32
    %c0_i32_0 = arith.constant 0 : i32
    %c0_i32_1 = arith.constant 0 : i32
    return %c0_i32, %c0_i32_0 : i32, i32
  }
  func.func @transform_2(%arg0: i32, %arg1: i32) -> (i32, i32) {
    %c0_i32 = arith.constant 0 : i32
    %c0_i32_0 = arith.constant 0 : i32
    %c0_i32_1 = arith.constant 0 : i32
    return %c0_i32, %c0_i32_0 : i32, i32
  }
  func.func @transform_3(%arg0: i32, %arg1: i32) -> (i32, i32) {
    %c0_i32 = arith.constant 0 : i32
    %c0_i32_0 = arith.constant 0 : i32
    %c0_i32_1 = arith.constant 0 : i32
    return %c0_i32, %c0_i32_0 : i32, i32
  }
  func.func @transform_4(%arg0: i32, %arg1: i32) -> (i32, i32, i32) {
    %c0_i32 = arith.constant 0 : i32
    %c0_i32_0 = arith.constant 0 : i32
    %c0_i32_1 = arith.constant 0 : i32
    return %arg1, %c0_i32, %c0_i32_0 : i32, i32, i32
  }
  func.func @transform_5(%arg0: i32, %arg1: i32) -> (i32, i32, i32) {
    %c0_i32 = arith.constant 0 : i32
    %c0_i32_0 = arith.constant 0 : i32
    %c0_i32_1 = arith.constant 0 : i32
    return %arg1, %c0_i32, %c0_i32_0 : i32, i32, i32
  }
  func.func @transform_6(%arg0: i32, %arg1: i32) -> (i32, i32, i32) {
    %c0_i32 = arith.constant 0 : i32
    %c0_i32_0 = arith.constant 0 : i32
    %c0_i32_1 = arith.constant 0 : i32
    return %arg1, %c0_i32, %c0_i32_0 : i32, i32, i32
  }
  func.func @transform_7(%arg0: i32, %arg1: i32) -> (i32, i32, i32) {
    %c0_i32 = arith.constant 0 : i32
    %c0_i32_0 = arith.constant 0 : i32
    %c0_i32_1 = arith.constant 0 : i32
    return %arg1, %c0_i32, %c0_i32_0 : i32, i32, i32
  }
  func.func @transform_8(%arg0: i32, %arg1: i32) -> (i32, i32, i32) {
    %c0_i32 = arith.constant 0 : i32
    %c0_i32_0 = arith.constant 0 : i32
    %c0_i32_1 = arith.constant 0 : i32
    return %arg1, %c0_i32, %c0_i32_0 : i32, i32, i32
  }
  func.func @transform_9(%arg0: i32, %arg1: i32) -> (i32, i32, i32) {
    %c0_i32 = arith.constant 0 : i32
    %c0_i32_0 = arith.constant 0 : i32
    %c0_i32_1 = arith.constant 0 : i32
    return %arg1, %c0_i32, %c0_i32_0 : i32, i32, i32
  }
  func.func @transform_10(%arg0: i32, %arg1: i32) -> (i32, i32, i32) {
    %c0_i32 = arith.constant 0 : i32
    %c0_i32_0 = arith.constant 0 : i32
    %c0_i32_1 = arith.constant 0 : i32
    return %arg1, %c0_i32, %c0_i32_0 : i32, i32, i32
  }
  func.func @transform_11(%arg0: i32, %arg1: i32) -> (i32, i32, i32) {
    %c0_i32 = arith.constant 0 : i32
    %c0_i32_0 = arith.constant 0 : i32
    %c0_i32_1 = arith.constant 0 : i32
    return %arg1, %c0_i32, %c0_i32_0 : i32, i32, i32
  }
  func.func @transform_12(%arg0: i32, %arg1: i32) -> (i32, i32, i32) {
    %c0_i32 = arith.constant 0 : i32
    %c0_i32_0 = arith.constant 0 : i32
    %c0_i32_1 = arith.constant 0 : i32
    return %arg1, %c0_i32, %c0_i32_0 : i32, i32, i32
  }
  func.func @transform_13(%arg0: i32, %arg1: i32) -> (i32, i32, i32) {
    %c0_i32 = arith.constant 0 : i32
    %c0_i32_0 = arith.constant 0 : i32
    %c0_i32_1 = arith.constant 0 : i32
    return %arg1, %c0_i32, %c0_i32_0 : i32, i32, i32
  }
  func.func @transform_14(%arg0: i32, %arg1: i32) -> (i32, i32, i32) {
    %c0_i32 = arith.constant 0 : i32
    %c0_i32_0 = arith.constant 0 : i32
    %c0_i32_1 = arith.constant 0 : i32
    return %arg1, %c0_i32, %c0_i32_0 : i32, i32, i32
  }
  func.func @transform_15(%arg0: i32, %arg1: i32) -> (i32, i32, i32) {
    %c0_i32 = arith.constant 0 : i32
    %c0_i32_0 = arith.constant 0 : i32
    %c0_i32_1 = arith.constant 0 : i32
    return %arg1, %c0_i32, %c0_i32_0 : i32, i32, i32
  }
  func.func @transform_16(%arg0: i32, %arg1: i32) -> (i32, i32, i32) {
    %c0_i32 = arith.constant 0 : i32
    %c0_i32_0 = arith.constant 0 : i32
    %c0_i32_1 = arith.constant 0 : i32
    return %arg0, %c0_i32, %c0_i32_0 : i32, i32, i32
  }
}

</mosaic_0001>

<llo_original>
// kernel: tpu_custom_call.1
$region0: #{tpu_custom_call.1}
  #allocation0 [shape = 'u32[]', space=smem, size = 0x4, offset = 0x4, fixed_abs, tag = 'smem constant byte address 0x4 - core index']
  #allocation1 [shape = 'u32[144,128]{1,0:T(1,128)}', space=vmem, size = 0x12000, scoped, tag = 'internal scratch']
  #allocation2 [shape = 'f32[16,32]{1,0:T(8,128)}', space=vmem, size = 0x2000, scoped, tag = 'scratch operand']
  %s0 = inlined_call_operand.hbm [shape: f32[2,8,8], index: 0, kind: input, shape index: {}]
  %s1 = inlined_call_operand.hbm [shape: f32[1,32], index: 1, kind: input, shape index: {}]
  %s2 = inlined_call_operand.hbm [shape: bf16[8,32], index: 2, kind: input, shape index: {}]
  %s3 = inlined_call_operand.hbm [shape: f32[1,32], index: 3, kind: input, shape index: {}]
  %s4 = inlined_call_operand.vmem [shape: bf16[2,32,96], index: 4, kind: input, shape index: {}]
  %s5 = inlined_call_operand.vmem [shape: f32[2,1,96], index: 5, kind: input, shape index: {}]
  %s6 = inlined_call_operand.vmem [shape: bf16[2,32,32], index: 6, kind: input, shape index: {}]
  %s7 = inlined_call_operand.vmem [shape: f32[2,1,32], index: 7, kind: input, shape index: {}]
  %s8 = inlined_call_operand.vmem [shape: f32[2,1,32], index: 8, kind: input, shape index: {}]
  %s9 = inlined_call_operand.vmem [shape: f32[2,1,32], index: 9, kind: input, shape index: {}]
  %s10 = inlined_call_operand.vmem [shape: bf16[2,32,64], index: 10, kind: input, shape index: {}]
  %s11 = inlined_call_operand.vmem [shape: f32[2,1,64], index: 11, kind: input, shape index: {}]
  %s12 = inlined_call_operand.vmem [shape: bf16[2,64,32], index: 12, kind: input, shape index: {}]
  %s13 = inlined_call_operand.vmem [shape: f32[2,1,32], index: 13, kind: input, shape index: {}]
  %s14 = inlined_call_operand.vmem [shape: f32[2,1,32], index: 14, kind: input, shape index: {}]
  %s15 = inlined_call_operand.vmem [shape: f32[2,1,32], index: 15, kind: input, shape index: {}]
  %s16 = inlined_call_operand.hbm [shape: f32[2,1,32], index: 16, kind: output, shape index: {}]
  %s17 = sld [smem:[#allocation0]]
  $region117: #{tpu_custom_call.1} parent=0
    _
  %s19 = ssub.s32 1, %s17
  %s20 = scalar_select 0, %s19, %s17
  $region1: #{tpu_custom_call.1} parent=0
    #allocation3 [shape = 'u8[8192]{0}', space=vmem, size = 0x2000, scoped, tag = 'input window, operand 0']
    #allocation4 [shape = 's32[2]{0}', space=sflag, size = 0x8, scoped, tag = 'scoped memory for tpu_custom_call.1']
    #allocation5 [shape = 's32[2]{0}', space=sflag, size = 0x8, scoped, tag = 'scoped memory for tpu_custom_call.1']
    #allocation6 [shape = 'u8[512]{0}', space=vmem, size = 0x400, scoped, tag = 'input window, operand 1, single buffered']
    #allocation7 [shape = 's32[1]{0}', space=sflag, size = 0x4, scoped, tag = 'scoped memory for tpu_custom_call.1']
    #allocation8 [shape = 'u8[2048]{0}', space=vmem, size = 0x800, scoped, tag = 'input window, operand 2, single buffered']
    #allocation9 [shape = 'u8[512]{0}', space=vmem, size = 0x400, scoped, tag = 'input window, operand 3, single buffered']
    #allocation10 [shape = 's32[1]{0}', space=sflag, size = 0x4, scoped, tag = 'scoped memory for tpu_custom_call.1']
    #allocation11 [shape = 'u8[1024]{0}', space=vmem, size = 0x400, scoped, tag = 'output window, operand 0']
    %21 = vsyncpa [#allocation4], 0
    %s22 = scalar_lea.sflag [#allocation4], 1
    %23 = vsyncpa %s22, 0
    %24 = vsyncpa [#allocation7], 0
    %25 = vsyncpa [#allocation10], 0
    %26 = vsyncpa [#allocation5], 0
    %s27 = scalar_lea.sflag [#allocation5], 1
    %28 = vsyncpa %s27, 0
    loop: start=0, step=1, limit=6
    $region2: #{tpu_custom_call.1} parent=1 // loop_pre_header
      _
    $region3: #{tpu_custom_call.1} parent=1 // loop_header
      %s30 = sphi 0, %s34
      %p31 = scmp.ge.s32.totalorder %s30, 6
      %s37 = sphi 0, %s49
      %s38 = sphi 0, %s45
      %s39 = sphi 0, %s37
      %s40 = sphi 0, %s38
      %s41 = sphi 0, %s39
      %s42 = sphi 0, %s40
      %s52 = sphi 0, %s54
      %s55 = sphi 0, %s52
      %s56 = sphi 0, %s55
      %s72 = sphi 0, %s56
      %s76 = sphi 0, %s76
      %s78 = sphi 0, %s76
      %s79 = sphi 0, %s78
      %s93 = sphi 0, %s79
      %s97 = sphi 0, %s97
      %s99 = sphi 0, %s97
      %s100 = sphi 0, %s99
      %s114 = sphi 0, %s100
      %s118 = sphi 0, %s118
      %s120 = sphi 0, %s118
      %s121 = sphi 0, %s120
      %s135 = sphi 0, %s121
      %s141 = sphi 0, %s143
      %s144 = sphi 0, %s141
      %s145 = sphi 0, %s144
      %s161 = sphi 0, %s145
      %s167 = sphi 0, %s169
      %s170 = sphi 0, %s167
      %s171 = sphi 0, %s170
      %s187 = sphi 0, %s171
      %s193 = sphi 0, %s195
      %s196 = sphi 0, %s193
      %s197 = sphi 0, %s196
      %s213 = sphi 0, %s197
      %s219 = sphi 0, %s221
      %s222 = sphi 0, %s219
      %s223 = sphi 0, %s222
      %s239 = sphi 0, %s223
      %s245 = sphi 0, %s247
      %s248 = sphi 0, %s245
      %s249 = sphi 0, %s248
      %s265 = sphi 0, %s249
      %s271 = sphi 0, %s273
      %s274 = sphi 0, %s271
      %s275 = sphi 0, %s274
      %s291 = sphi 0, %s275
      %s297 = sphi 0, %s299
      %s300 = sphi 0, %s297
      %s301 = sphi 0, %s300
      %s317 = sphi 0, %s301
      %s323 = sphi 0, %s325
      %s326 = sphi 0, %s323
      %s327 = sphi 0, %s326
      %s343 = sphi 0, %s327
      %s349 = sphi 0, %s351
      %s352 = sphi 0, %s349
      %s353 = sphi 0, %s352
      %s369 = sphi 0, %s353
      %s375 = sphi 0, %s377
      %s378 = sphi 0, %s375
      %s379 = sphi 0, %s378
      %s395 = sphi 0, %s379
      %s401 = sphi 0, %s403
      %s404 = sphi 0, %s401
      %s405 = sphi 0, %s404
      %s421 = sphi 0, %s405
      %s427 = sphi 0, %s429
      %s430 = sphi 0, %s427
      %s431 = sphi 0, %s430
      %s447 = sphi 0, %s431
      %s453 = sphi 0, %s455
      %s456 = sphi 0, %s453
      %s457 = sphi 0, %s456
      %s473 = sphi 0, %s457
    $region4: #{tpu_custom_call.1} parent=1 // loop_header_branch
      %33 = sbr.rel (%p31) target = $region8
    $region5: #{tpu_custom_call.1} parent=1 // loop_body
      %s35 = ssub.s32 %s30, 1
      %s36 = ssub.s32 %s30, 2
      %s43 = sadd.s32 1, %s38
      %p44 = scmp.ge.s32.totalorder %s43, 2
      %s45 = scalar_select %p44, 0, %s43
      %s46 = sadd.s32 1, %s37
      %s47 = scalar_select %p44, %s46, %s37
      %p48 = scmp.ge.s32.totalorder %s47, 2
      %s49 = scalar_select %p48, 0, %s47
      %s50 = ssub.s32 %s37, %s49
      %p51 = scmp.eq.s32.totalorder %s50, 0
      %s53 = sadd.s32 %s52, 1
      %s54 = scalar_select %p51, %s52, %s53
      %p57 = pneg %p51
      %p58 = scmp.eq.s32.totalorder %s30, 3
      %p59 = por %p57, %p58
      %p60 = scmp.ne.s32.totalorder %s52, %s55
      %p61 = scmp.eq.s32.totalorder %s30, 0
      %p62 = por %p60, %p61
      %p63 = scmp.ne.s32.totalorder %s52, %s55
      %p64 = scmp.eq.s32.totalorder %s35, 3
      %p65 = por %p63, %p64
      %p66 = scmp.ne.s32.totalorder %s55, %s56
      %p67 = scmp.eq.s32.totalorder %s35, 0
      %p68 = por %p66, %p67
      %p69 = scmp.ne.s32.totalorder %s55, %s56
      %p70 = scmp.eq.s32.totalorder %s36, 3
      %p71 = por %p69, %p70
      %p73 = scmp.ne.s32.totalorder %s56, %s72
      %p74 = scmp.eq.s32.totalorder %s36, 0
      %p75 = por %p73, %p74
      %s77 = sadd.s32 %s76, 1
      %p80 = scmp.eq.s32.totalorder %s30, 3
      %p81 = scmp.ne.s32.totalorder %s76, %s78
      %p82 = scmp.eq.s32.totalorder %s30, 0
      %p83 = por %p81, %p82
      %p84 = scmp.ne.s32.totalorder %s76, %s78
      %p85 = scmp.eq.s32.totalorder %s35, 3
      %p86 = por %p84, %p85
      %p87 = scmp.ne.s32.totalorder %s78, %s79
      %p88 = scmp.eq.s32.totalorder %s35, 0
      %p89 = por %p87, %p88
      %p90 = scmp.ne.s32.totalorder %s78, %s79
      %p91 = scmp.eq.s32.totalorder %s36, 3
      %p92 = por %p90, %p91
      %p94 = scmp.ne.s32.totalorder %s79, %s93
      %p95 = scmp.eq.s32.totalorder %s36, 0
      %p96 = por %p94, %p95
      %s98 = sadd.s32 %s97, 1
      %p101 = scmp.eq.s32.totalorder %s30, 3
      %p102 = scmp.ne.s32.totalorder %s97, %s99
      %p103 = scmp.eq.s32.totalorder %s30, 0
      %p104 = por %p102, %p103
      %p105 = scmp.ne.s32.totalorder %s97, %s99
      %p106 = scmp.eq.s32.totalorder %s35, 3
      %p107 = por %p105, %p106
      %p108 = scmp.ne.s32.totalorder %s99, %s100
      %p109 = scmp.eq.s32.totalorder %s35, 0
      %p110 = por %p108, %p109
      %p111 = scmp.ne.s32.totalorder %s99, %s100
      %p112 = scmp.eq.s32.totalorder %s36, 3
      %p113 = por %p111, %p112
      %p115 = scmp.ne.s32.totalorder %s100, %s114
      %p116 = scmp.eq.s32.totalorder %s36, 0
      %p117 = por %p115, %p116
      %s119 = sadd.s32 %s118, 1
      %p122 = scmp.eq.s32.totalorder %s30, 3
      %p123 = scmp.ne.s32.totalorder %s118, %s120
      %p124 = scmp.eq.s32.totalorder %s30, 0
      %p125 = por %p123, %p124
      %p126 = scmp.ne.s32.totalorder %s118, %s120
      %p127 = scmp.eq.s32.totalorder %s35, 3
      %p128 = por %p126, %p127
      %p129 = scmp.ne.s32.totalorder %s120, %s121
      %p130 = scmp.eq.s32.totalorder %s35, 0
      %p131 = por %p129, %p130
      %p132 = scmp.ne.s32.totalorder %s120, %s121
      %p133 = scmp.eq.s32.totalorder %s36, 3
      %p134 = por %p132, %p133
      %p136 = scmp.ne.s32.totalorder %s121, %s135
      %p137 = scmp.eq.s32.totalorder %s36, 0
      %p138 = por %p136, %p137
      %s139 = ssub.s32 %s38, %s45
      %p140 = scmp.eq.s32.totalorder %s139, 0
      %s142 = sadd.s32 %s141, 1
      %s143 = scalar_select %p140, %s141, %s142
      %p146 = pneg %p140
      %p147 = scmp.eq.s32.totalorder %s30, 3
      %p148 = por %p146, %p147
      %p149 = scmp.ne.s32.totalorder %s141, %s144
      %p150 = scmp.eq.s32.totalorder %s30, 0
      %p151 = por %p149, %p150
      %p152 = scmp.ne.s32.totalorder %s141, %s144
      %p153 = scmp.eq.s32.totalorder %s35, 3
      %p154 = por %p152, %p153
      %p155 = scmp.ne.s32.totalorder %s144, %s145
      %p156 = scmp.eq.s32.totalorder %s35, 0
      %p157 = por %p155, %p156
      %p158 = scmp.ne.s32.totalorder %s144, %s145
      %p159 = scmp.eq.s32.totalorder %s36, 3
      %p160 = por %p158, %p159
      %p162 = scmp.ne.s32.totalorder %s145, %s161
      %p163 = scmp.eq.s32.totalorder %s36, 0
      %p164 = por %p162, %p163
      %s165 = ssub.s32 %s38, %s45
      %p166 = scmp.eq.s32.totalorder %s165, 0
      %s168 = sadd.s32 %s167, 1
      %s169 = scalar_select %p166, %s167, %s168
      %p172 = pneg %p166
      %p173 = scmp.eq.s32.totalorder %s30, 3
      %p174 = por %p172, %p173
      %p175 = scmp.ne.s32.totalorder %s167, %s170
      %p176 = scmp.eq.s32.totalorder %s30, 0
      %p177 = por %p175, %p176
      %p178 = scmp.ne.s32.totalorder %s167, %s170
      %p179 = scmp.eq.s32.totalorder %s35, 3
      %p180 = por %p178, %p179
      %p181 = scmp.ne.s32.totalorder %s170, %s171
      %p182 = scmp.eq.s32.totalorder %s35, 0
      %p183 = por %p181, %p182
      %p184 = scmp.ne.s32.totalorder %s170, %s171
      %p185 = scmp.eq.s32.totalorder %s36, 3
      %p186 = por %p184, %p185
      %p188 = scmp.ne.s32.totalorder %s171, %s187
      %p189 = scmp.eq.s32.totalorder %s36, 0
      %p190 = por %p188, %p189
      %s191 = ssub.s32 %s38, %s45
      %p192 = scmp.eq.s32.totalorder %s191, 0
      %s194 = sadd.s32 %s193, 1
      %s195 = scalar_select %p192, %s193, %s194
      %p198 = pneg %p192
      %p199 = scmp.eq.s32.totalorder %s30, 3
      %p200 = por %p198, %p199
      %p201 = scmp.ne.s32.totalorder %s193, %s196
      %p202 = scmp.eq.s32.totalorder %s30, 0
      %p203 = por %p201, %p202
      %p204 = scmp.ne.s32.totalorder %s193, %s196
      %p205 = scmp.eq.s32.totalorder %s35, 3
      %p206 = por %p204, %p205
      %p207 = scmp.ne.s32.totalorder %s196, %s197
      %p208 = scmp.eq.s32.totalorder %s35, 0
      %p209 = por %p207, %p208
      %p210 = scmp.ne.s32.totalorder %s196, %s197
      %p211 = scmp.eq.s32.totalorder %s36, 3
      %p212 = por %p210, %p211
      %p214 = scmp.ne.s32.totalorder %s197, %s213
      %p215 = scmp.eq.s32.totalorder %s36, 0
      %p216 = por %p214, %p215
      %s217 = ssub.s32 %s38, %s45
      %p218 = scmp.eq.s32.totalorder %s217, 0
      %s220 = sadd.s32 %s219, 1
      %s221 = scalar_select %p218, %s219, %s220
      %p224 = pneg %p218
      %p225 = scmp.eq.s32.totalorder %s30, 3
      %p226 = por %p224, %p225
      %p227 = scmp.ne.s32.totalorder %s219, %s222
      %p228 = scmp.eq.s32.totalorder %s30, 0
      %p229 = por %p227, %p228
      %p230 = scmp.ne.s32.totalorder %s219, %s222
      %p231 = scmp.eq.s32.totalorder %s35, 3
      %p232 = por %p230, %p231
      %p233 = scmp.ne.s32.totalorder %s222, %s223
      %p234 = scmp.eq.s32.totalorder %s35, 0
      %p235 = por %p233, %p234
      %p236 = scmp.ne.s32.totalorder %s222, %s223
      %p237 = scmp.eq.s32.totalorder %s36, 3
      %p238 = por %p236, %p237
      %p240 = scmp.ne.s32.totalorder %s223, %s239
      %p241 = scmp.eq.s32.totalorder %s36, 0
      %p242 = por %p240, %p241
      %s243 = ssub.s32 %s38, %s45
      %p244 = scmp.eq.s32.totalorder %s243, 0
      %s246 = sadd.s32 %s245, 1
      %s247 = scalar_select %p244, %s245, %s246
      %p250 = pneg %p244
      %p251 = scmp.eq.s32.totalorder %s30, 3
      %p252 = por %p250, %p251
      %p253 = scmp.ne.s32.totalorder %s245, %s248
      %p254 = scmp.eq.s32.totalorder %s30, 0
      %p255 = por %p253, %p254
      %p256 = scmp.ne.s32.totalorder %s245, %s248
      %p257 = scmp.eq.s32.totalorder %s35, 3
      %p258 = por %p256, %p257
      %p259 = scmp.ne.s32.totalorder %s248, %s249
      %p260 = scmp.eq.s32.totalorder %s35, 0
      %p261 = por %p259, %p260
      %p262 = scmp.ne.s32.totalorder %s248, %s249
      %p263 = scmp.eq.s32.totalorder %s36, 3
      %p264 = por %p262, %p263
      %p266 = scmp.ne.s32.totalorder %s249, %s265
      %p267 = scmp.eq.s32.totalorder %s36, 0
      %p268 = por %p266, %p267
      %s269 = ssub.s32 %s38, %s45
      %p270 = scmp.eq.s32.totalorder %s269, 0
      %s272 = sadd.s32 %s271, 1
      %s273 = scalar_select %p270, %s271, %s272
      %p276 = pneg %p270
      %p277 = scmp.eq.s32.totalorder %s30, 3
      %p278 = por %p276, %p277
      %p279 = scmp.ne.s32.totalorder %s271, %s274
      %p280 = scmp.eq.s32.totalorder %s30, 0
      %p281 = por %p279, %p280
      %p282 = scmp.ne.s32.totalorder %s271, %s274
      %p283 = scmp.eq.s32.totalorder %s35, 3
      %p284 = por %p282, %p283
      %p285 = scmp.ne.s32.totalorder %s274, %s275
      %p286 = scmp.eq.s32.totalorder %s35, 0
      %p287 = por %p285, %p286
      %p288 = scmp.ne.s32.totalorder %s274, %s275
      %p289 = scmp.eq.s32.totalorder %s36, 3
      %p290 = por %p288, %p289
      %p292 = scmp.ne.s32.totalorder %s275, %s291
      %p293 = scmp.eq.s32.totalorder %s36, 0
      %p294 = por %p292, %p293
      %s295 = ssub.s32 %s38, %s45
      %p296 = scmp.eq.s32.totalorder %s295, 0
      %s298 = sadd.s32 %s297, 1
      %s299 = scalar_select %p296, %s297, %s298
      %p302 = pneg %p296
      %p303 = scmp.eq.s32.totalorder %s30, 3
      %p304 = por %p302, %p303
      %p305 = scmp.ne.s32.totalorder %s297, %s300
      %p306 = scmp.eq.s32.totalorder %s30, 0
      %p307 = por %p305, %p306
      %p308 = scmp.ne.s32.totalorder %s297, %s300
      %p309 = scmp.eq.s32.totalorder %s35, 3
      %p310 = por %p308, %p309
      %p311 = scmp.ne.s32.totalorder %s300, %s301
      %p312 = scmp.eq.s32.totalorder %s35, 0
      %p313 = por %p311, %p312
      %p314 = scmp.ne.s32.totalorder %s300, %s301
      %p315 = scmp.eq.s32.totalorder %s36, 3
      %p316 = por %p314, %p315
      %p318 = scmp.ne.s32.totalorder %s301, %s317
      %p319 = scmp.eq.s32.totalorder %s36, 0
      %p320 = por %p318, %p319
      %s321 = ssub.s32 %s38, %s45
      %p322 = scmp.eq.s32.totalorder %s321, 0
      %s324 = sadd.s32 %s323, 1
      %s325 = scalar_select %p322, %s323, %s324
      %p328 = pneg %p322
      %p329 = scmp.eq.s32.totalorder %s30, 3
      %p330 = por %p328, %p329
      %p331 = scmp.ne.s32.totalorder %s323, %s326
      %p332 = scmp.eq.s32.totalorder %s30, 0
      %p333 = por %p331, %p332
      %p334 = scmp.ne.s32.totalorder %s323, %s326
      %p335 = scmp.eq.s32.totalorder %s35, 3
      %p336 = por %p334, %p335
      %p337 = scmp.ne.s32.totalorder %s326, %s327
      %p338 = scmp.eq.s32.totalorder %s35, 0
      %p339 = por %p337, %p338
      %p340 = scmp.ne.s32.totalorder %s326, %s327
      %p341 = scmp.eq.s32.totalorder %s36, 3
      %p342 = por %p340, %p341
      %p344 = scmp.ne.s32.totalorder %s327, %s343
      %p345 = scmp.eq.s32.totalorder %s36, 0
      %p346 = por %p344, %p345
      %s347 = ssub.s32 %s38, %s45
      %p348 = scmp.eq.s32.totalorder %s347, 0
      %s350 = sadd.s32 %s349, 1
      %s351 = scalar_select %p348, %s349, %s350
      %p354 = pneg %p348
      %p355 = scmp.eq.s32.totalorder %s30, 3
      %p356 = por %p354, %p355
      %p357 = scmp.ne.s32.totalorder %s349, %s352
      %p358 = scmp.eq.s32.totalorder %s30, 0
      %p359 = por %p357, %p358
      %p360 = scmp.ne.s32.totalorder %s349, %s352
      %p361 = scmp.eq.s32.totalorder %s35, 3
      %p362 = por %p360, %p361
      %p363 = scmp.ne.s32.totalorder %s352, %s353
      %p364 = scmp.eq.s32.totalorder %s35, 0
      %p365 = por %p363, %p364
      %p366 = scmp.ne.s32.totalorder %s352, %s353
      %p367 = scmp.eq.s32.totalorder %s36, 3
      %p368 = por %p366, %p367
      %p370 = scmp.ne.s32.totalorder %s353, %s369
      %p371 = scmp.eq.s32.totalorder %s36, 0
      %p372 = por %p370, %p371
      %s373 = ssub.s32 %s38, %s45
      %p374 = scmp.eq.s32.totalorder %s373, 0
      %s376 = sadd.s32 %s375, 1
      %s377 = scalar_select %p374, %s375, %s376
      %p380 = pneg %p374
      %p381 = scmp.eq.s32.totalorder %s30, 3
      %p382 = por %p380, %p381
      %p383 = scmp.ne.s32.totalorder %s375, %s378
      %p384 = scmp.eq.s32.totalorder %s30, 0
      %p385 = por %p383, %p384
      %p386 = scmp.ne.s32.totalorder %s375, %s378
      %p387 = scmp.eq.s32.totalorder %s35, 3
      %p388 = por %p386, %p387
      %p389 = scmp.ne.s32.totalorder %s378, %s379
      %p390 = scmp.eq.s32.totalorder %s35, 0
      %p391 = por %p389, %p390
      %p392 = scmp.ne.s32.totalorder %s378, %s379
      %p393 = scmp.eq.s32.totalorder %s36, 3
      %p394 = por %p392, %p393
      %p396 = scmp.ne.s32.totalorder %s379, %s395
      %p397 = scmp.eq.s32.totalorder %s36, 0
      %p398 = por %p396, %p397
      %s399 = ssub.s32 %s38, %s45
      %p400 = scmp.eq.s32.totalorder %s399, 0
      %s402 = sadd.s32 %s401, 1
      %s403 = scalar_select %p400, %s401, %s402
      %p406 = pneg %p400
      %p407 = scmp.eq.s32.totalorder %s30, 3
      %p408 = por %p406, %p407
      %p409 = scmp.ne.s32.totalorder %s401, %s404
      %p410 = scmp.eq.s32.totalorder %s30, 0
      %p411 = por %p409, %p410
      %p412 = scmp.ne.s32.totalorder %s401, %s404
      %p413 = scmp.eq.s32.totalorder %s35, 3
      %p414 = por %p412, %p413
      %p415 = scmp.ne.s32.totalorder %s404, %s405
      %p416 = scmp.eq.s32.totalorder %s35, 0
      %p417 = por %p415, %p416
      %p418 = scmp.ne.s32.totalorder %s404, %s405
      %p419 = scmp.eq.s32.totalorder %s36, 3
      %p420 = por %p418, %p419
      %p422 = scmp.ne.s32.totalorder %s405, %s421
      %p423 = scmp.eq.s32.totalorder %s36, 0
      %p424 = por %p422, %p423
      %s425 = ssub.s32 %s38, %s45
      %p426 = scmp.eq.s32.totalorder %s425, 0
      %s428 = sadd.s32 %s427, 1
      %s429 = scalar_select %p426, %s427, %s428
      %p432 = pneg %p426
      %p433 = scmp.eq.s32.totalorder %s30, 3
      %p434 = por %p432, %p433
      %p435 = scmp.ne.s32.totalorder %s427, %s430
      %p436 = scmp.eq.s32.totalorder %s30, 0
      %p437 = por %p435, %p436
      %p438 = scmp.ne.s32.totalorder %s427, %s430
      %p439 = scmp.eq.s32.totalorder %s35, 3
      %p440 = por %p438, %p439
      %p441 = scmp.ne.s32.totalorder %s430, %s431
      %p442 = scmp.eq.s32.totalorder %s35, 0
      %p443 = por %p441, %p442
      %p444 = scmp.ne.s32.totalorder %s430, %s431
      %p445 = scmp.eq.s32.totalorder %s36, 3
      %p446 = por %p444, %p445
      %p448 = scmp.ne.s32.totalorder %s431, %s447
      %p449 = scmp.eq.s32.totalorder %s36, 0
      %p450 = por %p448, %p449
      %s451 = ssub.s32 %s37, %s49
      %p452 = scmp.eq.s32.totalorder %s451, 0
      %s454 = sadd.s32 %s453, 1
      %s455 = scalar_select %p452, %s453, %s454
      %p458 = pneg %p452
      %p459 = scmp.eq.s32.totalorder %s30, 3
      %p460 = por %p458, %p459
      %p461 = scmp.ne.s32.totalorder %s453, %s456
      %p462 = scmp.eq.s32.totalorder %s30, 0
      %p463 = por %p461, %p462
      %p464 = scmp.ne.s32.totalorder %s453, %s456
      %p465 = scmp.eq.s32.totalorder %s35, 3
      %p466 = por %p464, %p465
      %p467 = scmp.ne.s32.totalorder %s456, %s457
      %p468 = scmp.eq.s32.totalorder %s35, 0
      %p469 = por %p467, %p468
      %p470 = scmp.ne.s32.totalorder %s456, %s457
      %p471 = scmp.eq.s32.totalorder %s36, 3
      %p472 = por %p470, %p471
      %p474 = scmp.ne.s32.totalorder %s457, %s473
      %p475 = scmp.eq.s32.totalorder %s36, 0
      %p476 = por %p474, %p475
      %p477 = scmp.le.s32.totalorder 1, %s30
      %p478 = scmp.lt.s32.totalorder %s30, 5
      %p479 = pnand %p477, %p478
      %p480 = pneg %p479
      // Predicated region
      $region9: #{tpu_custom_call.1} parent=5 // pred_check
        _
      $region10: #{tpu_custom_call.1} parent=5 // pred_check_branch
        %482 = sbr.rel (%p479) target = $region12
      $region11: #{tpu_custom_call.1} parent=5 // pred_region
        %s483 = ssub.s32 %s30, 1
        // Predicated region
        $region13: #{tpu_custom_call.1} parent=11 // pred_check
          %p484 = pneg %p89
        $region14: #{tpu_custom_call.1} parent=11 // pred_check_branch
          %486 = sbr.rel (%p484) target = $region16
        $region15: #{tpu_custom_call.1} parent=11 // pred_region
          %s488 = ssub.s32 16, 16
          %489 = vsyncadd [#allocation7], %s488
          %s491 = sshll.u32 [#allocation6], 4
          %s492 = int_to_ptr.vmem [resolvable:$true] %s491
          %494 = dma.hbm_to_vmem [thread:$0]  %s1, 16, %s492, [#allocation7]
        $region16: #{tpu_custom_call.1} parent=11 // pred_fallthru
          _
        // Predicated region
        $region17: #{tpu_custom_call.1} parent=11 // pred_check
          %p495 = pneg %p110
        $region18: #{tpu_custom_call.1} parent=11 // pred_check_branch
          %497 = sbr.rel (%p495) target = $region20
        $region19: #{tpu_custom_call.1} parent=11 // pred_region
          %s499 = ssub.s32 64, 64
          %500 = vsyncadd [#allocation7], %s499
          %s502 = sshll.u32 [#allocation8], 4
          %s503 = int_to_ptr.vmem [resolvable:$true] %s502
          %505 = dma.hbm_to_vmem [thread:$0]  %s2, 64, %s503, [#allocation7]
        $region20: #{tpu_custom_call.1} parent=11 // pred_fallthru
          _
        // Predicated region
        $region21: #{tpu_custom_call.1} parent=11 // pred_check
          %p506 = pneg %p131
        $region22: #{tpu_custom_call.1} parent=11 // pred_check_branch
          %508 = sbr.rel (%p506) target = $region24
        $region23: #{tpu_custom_call.1} parent=11 // pred_region
          %s510 = ssub.s32 16, 16
          %511 = vsyncadd [#allocation10], %s510
          %s513 = sshll.u32 [#allocation9], 4
          %s514 = int_to_ptr.vmem [resolvable:$true] %s513
          %516 = dma.hbm_to_vmem [thread:$0]  %s3, 16, %s514, [#allocation10]
        $region24: #{tpu_custom_call.1} parent=11 // pred_fallthru
          _
      $region12: #{tpu_custom_call.1} parent=5 // pred_fallthru
        _
      %p517 = scmp.lt.s32.totalorder %s30, 4
      // Predicated region
      $region25: #{tpu_custom_call.1} parent=5 // pred_check
        %p518 = pneg %p517
      $region26: #{tpu_custom_call.1} parent=5 // pred_check_branch
        %520 = sbr.rel (%p518) target = $region28
      $region27: #{tpu_custom_call.1} parent=5 // pred_region
        // Predicated region
        $region29: #{tpu_custom_call.1} parent=27 // pred_check
          %p521 = pneg %p62
        $region30: #{tpu_custom_call.1} parent=27 // pred_check_branch
          %523 = sbr.rel (%p521) target = $region32
        $region31: #{tpu_custom_call.1} parent=27 // pred_region
          %s524 = sand.u32 %s52, 1
          %s525 = scalar_lea.sflag [#allocation4], %s524
          %s526 = sand.u32 %s52, 1
          %s527 = smul.addr %s526, 8
          %s528 = scalar_lea.vmem [#allocation3], %s527
          %s530 = ssub.s32 128, 128
          %531 = vsyncadd %s525, %s530
          %s532 = smul.addr %s37, 128
          %s533 = scalar_lea.hbm %s0, %s532
          %s535 = sshll.u32 %s528, 4
          %s536 = int_to_ptr.vmem [resolvable:$true] %s535
          %538 = dma.hbm_to_vmem [thread:$0]  %s533, 128, %s536, %s525
        $region32: #{tpu_custom_call.1} parent=27 // pred_fallthru
          _
        // Predicated region
        $region33: #{tpu_custom_call.1} parent=27 // pred_check
          %p539 = pneg %p151
        $region34: #{tpu_custom_call.1} parent=27 // pred_check_branch
          %541 = sbr.rel (%p539) target = $region36
        $region35: #{tpu_custom_call.1} parent=27 // pred_region
          %p542 = scmp.lt.s32.totalorder %s38, 1
          %s543 = scalar_select %p542, %s38, 1
          %s544 = smul.addr %s543, 4
          %s545 = smul.addr %s544, 4
          %s546 = scalar_lea.vmem %s4, %s545
        $region36: #{tpu_custom_call.1} parent=27 // pred_fallthru
          _
        // Predicated region
        $region37: #{tpu_custom_call.1} parent=27 // pred_check
          %p547 = pneg %p177
        $region38: #{tpu_custom_call.1} parent=27 // pred_check_branch
          %549 = sbr.rel (%p547) target = $region40
        $region39: #{tpu_custom_call.1} parent=27 // pred_region
          %p550 = scmp.lt.s32.totalorder %s38, 1
          %s551 = scalar_select %p550, %s38, 1
          %s552 = scalar_lea.vmem %s5, %s551
        $region40: #{tpu_custom_call.1} parent=27 // pred_fallthru
          _
        // Predicated region
        $region41: #{tpu_custom_call.1} parent=27 // pred_check
          %p553 = pneg %p203
        $region42: #{tpu_custom_call.1} parent=27 // pred_check_branch
          %555 = sbr.rel (%p553) target = $region44
        $region43: #{tpu_custom_call.1} parent=27 // pred_region
          %p556 = scmp.lt.s32.totalorder %s38, 1
          %s557 = scalar_select %p556, %s38, 1
          %s558 = smul.addr %s557, 4
          %s559 = smul.addr %s558, 4
          %s560 = scalar_lea.vmem %s6, %s559
        $region44: #{tpu_custom_call.1} parent=27 // pred_fallthru
          _
        // Predicated region
        $region45: #{tpu_custom_call.1} parent=27 // pred_check
          %p561 = pneg %p229
        $region46: #{tpu_custom_call.1} parent=27 // pred_check_branch
          %563 = sbr.rel (%p561) target = $region48
        $region47: #{tpu_custom_call.1} parent=27 // pred_region
          %p564 = scmp.lt.s32.totalorder %s38, 1
          %s565 = scalar_select %p564, %s38, 1
          %s566 = scalar_lea.vmem %s7, %s565
        $region48: #{tpu_custom_call.1} parent=27 // pred_fallthru
          _
        // Predicated region
        $region49: #{tpu_custom_call.1} parent=27 // pred_check
          %p567 = pneg %p255
        $region50: #{tpu_custom_call.1} parent=27 // pred_check_branch
          %569 = sbr.rel (%p567) target = $region52
        $region51: #{tpu_custom_call.1} parent=27 // pred_region
          %p570 = scmp.lt.s32.totalorder %s38, 1
          %s571 = scalar_select %p570, %s38, 1
          %s572 = scalar_lea.vmem %s8, %s571
        $region52: #{tpu_custom_call.1} parent=27 // pred_fallthru
          _
        // Predicated region
        $region53: #{tpu_custom_call.1} parent=27 // pred_check
          %p573 = pneg %p281
        $region54: #{tpu_custom_call.1} parent=27 // pred_check_branch
          %575 = sbr.rel (%p573) target = $region56
        $region55: #{tpu_custom_call.1} parent=27 // pred_region
          %p576 = scmp.lt.s32.totalorder %s38, 1
          %s577 = scalar_select %p576, %s38, 1
          %s578 = scalar_lea.vmem %s9, %s577
        $region56: #{tpu_custom_call.1} parent=27 // pred_fallthru
          _
        // Predicated region
        $region57: #{tpu_custom_call.1} parent=27 // pred_check
          %p579 = pneg %p307
        $region58: #{tpu_custom_call.1} parent=27 // pred_check_branch
          %581 = sbr.rel (%p579) target = $region60
        $region59: #{tpu_custom_call.1} parent=27 // pred_region
          %p582 = scmp.lt.s32.totalorder %s38, 1
          %s583 = scalar_select %p582, %s38, 1
          %s584 = smul.addr %s583, 4
          %s585 = smul.addr %s584, 4
          %s586 = scalar_lea.vmem %s10, %s585
        $region60: #{tpu_custom_call.1} parent=27 // pred_fallthru
          _
        // Predicated region
        $region61: #{tpu_custom_call.1} parent=27 // pred_check
          %p587 = pneg %p333
        $region62: #{tpu_custom_call.1} parent=27 // pred_check_branch
          %589 = sbr.rel (%p587) target = $region64
        $region63: #{tpu_custom_call.1} parent=27 // pred_region
          %p590 = scmp.lt.s32.totalorder %s38, 1
          %s591 = scalar_select %p590, %s38, 1
          %s592 = scalar_lea.vmem %s11, %s591
        $region64: #{tpu_custom_call.1} parent=27 // pred_fallthru
          _
        // Predicated region
        $region65: #{tpu_custom_call.1} parent=27 // pred_check
          %p593 = pneg %p359
        $region66: #{tpu_custom_call.1} parent=27 // pred_check_branch
          %595 = sbr.rel (%p593) target = $region68
        $region67: #{tpu_custom_call.1} parent=27 // pred_region
          %p596 = scmp.lt.s32.totalorder %s38, 1
          %s597 = scalar_select %p596, %s38, 1
          %s598 = smul.addr %s597, 8
          %s599 = smul.addr %s598, 4
          %s600 = scalar_lea.vmem %s12, %s599
        $region68: #{tpu_custom_call.1} parent=27 // pred_fallthru
          _
        // Predicated region
        $region69: #{tpu_custom_call.1} parent=27 // pred_check
          %p601 = pneg %p385
        $region70: #{tpu_custom_call.1} parent=27 // pred_check_branch
          %603 = sbr.rel (%p601) target = $region72
        $region71: #{tpu_custom_call.1} parent=27 // pred_region
          %p604 = scmp.lt.s32.totalorder %s38, 1
          %s605 = scalar_select %p604, %s38, 1
          %s606 = scalar_lea.vmem %s13, %s605
        $region72: #{tpu_custom_call.1} parent=27 // pred_fallthru
          _
        // Predicated region
        $region73: #{tpu_custom_call.1} parent=27 // pred_check
          %p607 = pneg %p411
        $region74: #{tpu_custom_call.1} parent=27 // pred_check_branch
          %609 = sbr.rel (%p607) target = $region76
        $region75: #{tpu_custom_call.1} parent=27 // pred_region
          %p610 = scmp.lt.s32.totalorder %s38, 1
          %s611 = scalar_select %p610, %s38, 1
          %s612 = scalar_lea.vmem %s14, %s611
        $region76: #{tpu_custom_call.1} parent=27 // pred_fallthru
          _
        // Predicated region
        $region77: #{tpu_custom_call.1} parent=27 // pred_check
          %p613 = pneg %p437
        $region78: #{tpu_custom_call.1} parent=27 // pred_check_branch
          %615 = sbr.rel (%p613) target = $region80
        $region79: #{tpu_custom_call.1} parent=27 // pred_region
          %p616 = scmp.lt.s32.totalorder %s38, 1
          %s617 = scalar_select %p616, %s38, 1
          %s618 = scalar_lea.vmem %s15, %s617
        $region80: #{tpu_custom_call.1} parent=27 // pred_fallthru
          _
      $region28: #{tpu_custom_call.1} parent=5 // pred_fallthru
        _
      %p619 = scmp.le.s32.totalorder 1, %s30
      %p620 = scmp.lt.s32.totalorder %s30, 5
      %p621 = pnand %p619, %p620
      %p622 = pneg %p621
      // Predicated region
      $region81: #{tpu_custom_call.1} parent=5 // pred_check
        _
      $region82: #{tpu_custom_call.1} parent=5 // pred_check_branch
        %624 = sbr.rel (%p621) target = $region84
      $region83: #{tpu_custom_call.1} parent=5 // pred_region
        %s625 = ssub.s32 %s30, 1
        %s626 = sand.u32 %s55, 1
        %s627 = scalar_lea.sflag [#allocation4], %s626
        %s628 = sand.u32 %s55, 1
        %s629 = smul.addr %s628, 8
        %s630 = scalar_lea.vmem [#allocation3], %s629
        // Predicated region
        $region85: #{tpu_custom_call.1} parent=83 // pred_check
          %p631 = pneg %p68
        $region86: #{tpu_custom_call.1} parent=83 // pred_check_branch
          %633 = sbr.rel (%p631) target = $region88
        $region87: #{tpu_custom_call.1} parent=83 // pred_region
          %634 = dma.done %s627, 128
        $region88: #{tpu_custom_call.1} parent=83 // pred_fallthru
          _
        // Predicated region
        $region89: #{tpu_custom_call.1} parent=83 // pred_check
          %p635 = pneg %p89
        $region90: #{tpu_custom_call.1} parent=83 // pred_check_branch
          %637 = sbr.rel (%p635) target = $region92
        $region91: #{tpu_custom_call.1} parent=83 // pred_region
          %638 = dma.done [#allocation7], 16
        $region92: #{tpu_custom_call.1} parent=83 // pred_fallthru
          _
        // Predicated region
        $region93: #{tpu_custom_call.1} parent=83 // pred_check
          %p639 = pneg %p110
        $region94: #{tpu_custom_call.1} parent=83 // pred_check_branch
          %641 = sbr.rel (%p639) target = $region96
        $region95: #{tpu_custom_call.1} parent=83 // pred_region
          %642 = dma.done [#allocation7], 64
        $region96: #{tpu_custom_call.1} parent=83 // pred_fallthru
          _
        // Predicated region
        $region97: #{tpu_custom_call.1} parent=83 // pred_check
          %p643 = pneg %p131
        $region98: #{tpu_custom_call.1} parent=83 // pred_check_branch
          %645 = sbr.rel (%p643) target = $region100
        $region99: #{tpu_custom_call.1} parent=83 // pred_region
          %646 = dma.done [#allocation10], 16
        $region100: #{tpu_custom_call.1} parent=83 // pred_fallthru
          _
        %s647 = sand.u32 %s55, 1
        %s648 = scalar_lea.sflag [#allocation4], %s647
        %s649 = sand.u32 %s55, 1
        %s650 = smul.addr %s649, 8
        %s651 = scalar_lea.vmem [#allocation3], %s650
        %p652 = pneg %p68
        %p653 = pneg %p65
        %p654 = pneg %p89
        %p655 = pneg %p86
        %p656 = pneg %p110
        %p657 = pneg %p107
        %p658 = pneg %p131
        %p659 = pneg %p128
        %p660 = scmp.lt.s32.totalorder %s40, 1
        %s661 = scalar_select %p660, %s40, 1
        %s662 = smul.addr %s661, 4
        %s663 = smul.addr %s662, 4
        %s664 = scalar_lea.vmem %s4, %s663
        %p665 = pneg %p157
        %p666 = pneg %p154
        %p667 = scmp.lt.s32.totalorder %s40, 1
        %s668 = scalar_select %p667, %s40, 1
        %s669 = scalar_lea.vmem %s5, %s668
        %p670 = pneg %p183
        %p671 = pneg %p180
        %p672 = scmp.lt.s32.totalorder %s40, 1
        %s673 = scalar_select %p672, %s40, 1
        %s674 = smul.addr %s673, 4
        %s675 = smul.addr %s674, 4
        %s676 = scalar_lea.vmem %s6, %s675
        %p677 = pneg %p209
        %p678 = pneg %p206
        %p679 = scmp.lt.s32.totalorder %s40, 1
        %s680 = scalar_select %p679, %s40, 1
        %s681 = scalar_lea.vmem %s7, %s680
        %p682 = pneg %p235
        %p683 = pneg %p232
        %p684 = scmp.lt.s32.totalorder %s40, 1
        %s685 = scalar_select %p684, %s40, 1
        %s686 = scalar_lea.vmem %s8, %s685
        %p687 = pneg %p261
        %p688 = pneg %p258
        %p689 = scmp.lt.s32.totalorder %s40, 1
        %s690 = scalar_select %p689, %s40, 1
        %s691 = scalar_lea.vmem %s9, %s690
        %p692 = pneg %p287
        %p693 = pneg %p284
        %p694 = scmp.lt.s32.totalorder %s40, 1
        %s695 = scalar_select %p694, %s40, 1
        %s696 = smul.addr %s695, 4
        %s697 = smul.addr %s696, 4
        %s698 = scalar_lea.vmem %s10, %s697
        %p699 = pneg %p313
        %p700 = pneg %p310
        %p701 = scmp.lt.s32.totalorder %s40, 1
        %s702 = scalar_select %p701, %s40, 1
        %s703 = scalar_lea.vmem %s11, %s702
        %p704 = pneg %p339
        %p705 = pneg %p336
        %p706 = scmp.lt.s32.totalorder %s40, 1
        %s707 = scalar_select %p706, %s40, 1
        %s708 = smul.addr %s707, 8
        %s709 = smul.addr %s708, 4
        %s710 = scalar_lea.vmem %s12, %s709
        %p711 = pneg %p365
        %p712 = pneg %p362
        %p713 = scmp.lt.s32.totalorder %s40, 1
        %s714 = scalar_select %p713, %s40, 1
        %s715 = scalar_lea.vmem %s13, %s714
        %p716 = pneg %p391
        %p717 = pneg %p388
        %p718 = scmp.lt.s32.totalorder %s40, 1
        %s719 = scalar_select %p718, %s40, 1
        %s720 = scalar_lea.vmem %s14, %s719
        %p721 = pneg %p417
        %p722 = pneg %p414
        %p723 = scmp.lt.s32.totalorder %s40, 1
        %s724 = scalar_select %p723, %s40, 1
        %s725 = scalar_lea.vmem %s15, %s724
        %p726 = pneg %p443
        %p727 = pneg %p440
        %p728 = pneg %p469
        %p729 = pneg %p466
        %s730 = sand.u32 %s456, 1
        %s731 = scalar_lea.sflag [#allocation5], %s730
        %s732 = sand.u32 %s456, 1
        %s733 = scalar_lea.vmem [#allocation11], %s732
        %p734 = scmp.lt.s32.totalorder %s40, 1
        %s735 = scalar_select %p734, %s40, 1
        %s736 = smul.addr %s735, 4
        %s737 = smul.addr %s736, 4
        %s738 = scalar_lea.vmem %s4, %s737
        %p739 = scmp.lt.s32.totalorder %s40, 1
        %s740 = scalar_select %p739, %s40, 1
        %s741 = scalar_lea.vmem %s5, %s740
        %p742 = scmp.lt.s32.totalorder %s40, 1
        %s743 = scalar_select %p742, %s40, 1
        %s744 = smul.addr %s743, 4
        %s745 = smul.addr %s744, 4
        %s746 = scalar_lea.vmem %s6, %s745
        %p747 = scmp.lt.s32.totalorder %s40, 1
        %s748 = scalar_select %p747, %s40, 1
        %s749 = scalar_lea.vmem %s7, %s748
        %p750 = scmp.lt.s32.totalorder %s40, 1
        %s751 = scalar_select %p750, %s40, 1
        %s752 = scalar_lea.vmem %s8, %s751
        %p753 = scmp.lt.s32.totalorder %s40, 1
        %s754 = scalar_select %p753, %s40, 1
        %s755 = scalar_lea.vmem %s9, %s754
        %p756 = scmp.lt.s32.totalorder %s40, 1
        %s757 = scalar_select %p756, %s40, 1
        %s758 = smul.addr %s757, 4
        %s759 = smul.addr %s758, 4
        %s760 = scalar_lea.vmem %s10, %s759
        %p761 = scmp.lt.s32.totalorder %s40, 1
        %s762 = scalar_select %p761, %s40, 1
        %s763 = scalar_lea.vmem %s11, %s762
        %p764 = scmp.lt.s32.totalorder %s40, 1
        %s765 = scalar_select %p764, %s40, 1
        %s766 = smul.addr %s765, 8
        %s767 = smul.addr %s766, 4
        %s768 = scalar_lea.vmem %s12, %s767
        %p769 = scmp.lt.s32.totalorder %s40, 1
        %s770 = scalar_select %p769, %s40, 1
        %s771 = scalar_lea.vmem %s13, %s770
        %p772 = scmp.lt.s32.totalorder %s40, 1
        %s773 = scalar_select %p772, %s40, 1
        %s774 = scalar_lea.vmem %s14, %s773
        %p775 = scmp.lt.s32.totalorder %s40, 1
        %s776 = scalar_select %p775, %s40, 1
        %s777 = scalar_lea.vmem %s15, %s776
        %p779 = scmp.eq.s32.totalorder %s40, 0
        // Predicated region
        $region101: #{tpu_custom_call.1} parent=83 // pred_check
          %p780 = pneg %p779
        $region102: #{tpu_custom_call.1} parent=83 // pred_check_branch
          %782 = sbr.rel (%p780) target = $region104
        $region103: #{tpu_custom_call.1} parent=83 // pred_region
          %v783 = vld [vmem:[%s630] sm:$0xff]
          %v784 = vpack.c.bf16 %v783, %v783
          %v785 = vld [vmem:[#allocation8] sm:$0xf]
          %v786 = vld [vmem:[#allocation9] sm:$0x1]
          %v788 = vlaneseq
          %v789 = vshrl.u32 %v788, 7
          %v790 = vsub.s32 0, %v789
          %v791 = vrot.slane %v786, %v790
          %vm793 = vcmask 64512
          %v795 = vsel %vm793, %v784, 0
          %vm797 = vcmask 1043456
          %v799 = vsel %vm797, %v785, 0
          %801 = vmatprep.subr.bf16.mxu0 0
          %802 = vmatpush1.bf16.msra.mxu0 0
          %803 = vmatprep.subr.bf16.mxu0 0
          %804 = vmatpush1.bf16.msra.mxu0 0
          %805 = vmatprep.subr.bf16.mxu0 0
          %806 = vmatpush1.bf16.msra.mxu0 0
          %807 = vmatprep.subr.bf16.mxu0 0
          %808 = vmatpush1.bf16.msra.mxu0 0
          %809 = vmatprep.subr.bf16.mxu0 0
          %810 = vmatpush1.bf16.msra.mxu0 0
          %811 = vmatprep.subr.bf16.mxu0 0
          %812 = vmatpush1.bf16.msra.mxu0 0
          %813 = vmatprep.subr.bf16.mxu0 0
          %814 = vmatpush1.bf16.msra.mxu0 0
          %815 = vmatprep.subr.bf16.mxu0 0
          %816 = vmatpush1.bf16.msra.mxu0 %v799
          %817 = vmatprep.subr.bf16.mxu0 0
          %818 = vmatpush2.bf16.msra.mxu0 0
          %819 = vmatprep.subr.bf16.mxu0 0
          %820 = vmatpush2.bf16.msra.mxu0 0
          %821 = vmatprep.subr.bf16.mxu0 0
          %822 = vmatpush2.bf16.msra.mxu0 0
          %823 = vmatprep.subr.bf16.mxu0 0
          %824 = vmatpush2.bf16.msra.mxu0 0
          %825 = vmatprep.subr.bf16.mxu0 0
          %826 = vmatpush2.bf16.msra.mxu0 0
          %827 = vmatprep.subr.bf16.mxu0 0
          %828 = vmatpush2.bf16.msra.mxu0 0
          %829 = vmatprep.subr.bf16.mxu0 0
          %830 = vmatpush2.bf16.msra.mxu0 0
          %831 = vmatprep.subr.bf16.mxu0 0
          %832 = vmatpush2.bf16.msra.mxu0 0
          %833 = vmatprep.mubr.bf16.mxu0 0
          %834 = vmatmul.mubr.bf16.gmra.mxu0 %v795
          %v835 = vpop.f32.mrf.mxu0
          %v836 = vadd.f32 %v791, %v835
          %v837 = vpop.f32.mrf.mxu0
          %v838 = vpop.f32.mrf.mxu0
          %v839 = vpop.f32.mrf.mxu0
          %840 = vdwg.mxu0
          %v841 = vld [vmem:[#allocation6] sm:$0x1]
          %v843 = vrot.slane %v836, 7
          %vm845 = vcmask 1040384
          %v846 = vsel %vm845, %v841, %v843
          %v847 = vsel %vm845, %v843, 0.0
          %vm848 = vcmask 261120
          %849 = vst.msk [vmem:[#allocation2] sm:$0xff] %vm848, %v846
          %850 = vst.msk [vmem:[#allocation2 + $0x8] sm:$0xff] %vm848, %v847
        $region104: #{tpu_custom_call.1} parent=83 // pred_fallthru
          _
        %v851 = vld [vmem:[#allocation2] sm:$0xff]
        %v852 = vld [vmem:[#allocation2 + $0x8] sm:$0xff]
        %v853 = vlaneseq
        %v854 = vand.u32 %v853, 127
        %vm855 = vcmp.eq.s32.totalorder %v854, 0
        %vm856 = vcmp.ge.s32.totalorder %v854, 9
        %vm857 = vmor %vm855, %vm856
        %v858 = vsel %vm857, -1e+30, 0.0
        %v859 = vpack.c.bf16 %v852, %v851
        %v860 = vld [vmem:[%s738] sm:$0xf]
        %v861 = vld [vmem:[%s738 + $0x4] sm:$0xf]
        %v862 = vld [vmem:[%s738 + $0x8] sm:$0xf]
        %v863 = vld [vmem:[%s738 + $0xc] sm:$0xf]
        %v864 = vld [vmem:[%s741] sm:$0x1]
        %v866 = vlaneseq
        %v867 = vshrl.u32 %v866, 7
        %v868 = vsub.s32 0, %v867
        %v869 = vrot.slane %v864, %v868
        %v875 = vunpack.c.l.b16 %v860
        %v876 = vunpack.c.l.b16 %v861
        %v877 = vunpack.c.l.b16 %v862
        %v878 = vunpack.c.l.b16 %v863
        %v879 = vpack.c.b16 %v876, %v875
        %v880 = vpack.c.b16 %v878, %v877
        %vm883 = vcmask 261120
        %v885 = vsel %vm883, %v859, 0
        %887 = vmatprep.subr.bf16.mxu0 0
        %888 = vmatpush1.bf16.msra.mxu0 0
        %889 = vmatprep.subr.bf16.mxu0 0
        %890 = vmatpush1.bf16.msra.mxu0 0
        %891 = vmatprep.subr.bf16.mxu0 0
        %892 = vmatpush1.bf16.msra.mxu0 0
        %893 = vmatprep.subr.bf16.mxu0 0
        %894 = vmatpush1.bf16.msra.mxu0 0
        %895 = vmatprep.subr.bf16.mxu0 0
        %896 = vmatpush1.bf16.msra.mxu0 0
        %897 = vmatprep.subr.bf16.mxu0 0
        %898 = vmatpush1.bf16.msra.mxu0 0
        %899 = vmatprep.subr.bf16.mxu0 0
        %900 = vmatpush1.bf16.msra.mxu0 %v880
        %901 = vmatprep.subr.bf16.mxu0 0
        %902 = vmatpush1.bf16.msra.mxu0 %v879
        %903 = vmatprep.subr.bf16.mxu0 0
        %904 = vmatpush2.bf16.msra.mxu0 0
        %905 = vmatprep.subr.bf16.mxu0 0
        %906 = vmatpush2.bf16.msra.mxu0 0
        %907 = vmatprep.subr.bf16.mxu0 0
        %908 = vmatpush2.bf16.msra.mxu0 0
        %909 = vmatprep.subr.bf16.mxu0 0
        %910 = vmatpush2.bf16.msra.mxu0 0
        %911 = vmatprep.subr.bf16.mxu0 0
        %912 = vmatpush2.bf16.msra.mxu0 0
        %913 = vmatprep.subr.bf16.mxu0 0
        %914 = vmatpush2.bf16.msra.mxu0 0
        %915 = vmatprep.subr.bf16.mxu0 0
        %916 = vmatpush2.bf16.msra.mxu0 0
        %917 = vmatprep.subr.bf16.mxu0 0
        %918 = vmatpush2.bf16.msra.mxu0 0
        %919 = vmatprep.mubr.bf16.mxu0 0
        %920 = vmatmul.mubr.bf16.gmra.mxu0 %v885
        %v921 = vpop.f32.mrf.mxu0
        %v922 = vadd.f32 %v869, %v921
        %v923 = vpop.f32.mrf.mxu0
        %v924 = vpop.f32.mrf.mxu0
        %v925 = vadd.f32 %v869, %v924
        %v926 = vpop.f32.mrf.mxu0
        %927 = vdwg.mxu0
        %v928 = vpack.c.bf16 %v925, %v922
        %930 = vrot.lane.b32.xlu0 %v928, 120
        %v931 = vpop.permute.xlu0 %930
        %932 = vrot.lane.b32.xlu0 %v928, 112
        %v933 = vpop.permute.xlu0 %932
        %934 = vrot.lane.b32.xlu0 %v928, 104
        %v935 = vpop.permute.xlu0 %934
        %936 = vrot.lane.b32.xlu0 %v928, 96
        %v937 = vpop.permute.xlu0 %936
        %vm938 = vcmask 64512
        %v940 = vsel %vm938, %v928, 0
        %v943 = vsel %vm938, %v937, 0
        %945 = vmatprep.subr.bf16.mxu0 0
        %946 = vmatpush1.bf16.xpose.msra.mxu0 0
        %947 = vmatprep.subr.bf16.mxu0 0
        %948 = vmatpush1.bf16.xpose.msra.mxu0 0
        %949 = vmatprep.subr.bf16.mxu0 0
        %950 = vmatpush1.bf16.xpose.msra.mxu0 0
        %951 = vmatprep.subr.bf16.mxu0 0
        %952 = vmatpush1.bf16.xpose.msra.mxu0 0
        %953 = vmatprep.subr.bf16.mxu0 0
        %954 = vmatpush1.bf16.xpose.msra.mxu0 0
        %955 = vmatprep.subr.bf16.mxu0 0
        %956 = vmatpush1.bf16.xpose.msra.mxu0 0
        %957 = vmatprep.subr.bf16.mxu0 0
        %958 = vmatpush1.bf16.xpose.msra.mxu0 0
        %959 = vmatprep.subr.bf16.mxu0 0
        %960 = vmatpush1.bf16.xpose.msra.mxu0 %v943
        %961 = vmatprep.subr.bf16.mxu0 0
        %962 = vmatpush2.bf16.xpose.msra.mxu0 0
        %963 = vmatprep.subr.bf16.mxu0 0
        %964 = vmatpush2.bf16.xpose.msra.mxu0 0
        %965 = vmatprep.subr.bf16.mxu0 0
        %966 = vmatpush2.bf16.xpose.msra.mxu0 0
        %967 = vmatprep.subr.bf16.mxu0 0
        %968 = vmatpush2.bf16.xpose.msra.mxu0 0
        %969 = vmatprep.subr.bf16.mxu0 0
        %970 = vmatpush2.bf16.xpose.msra.mxu0 0
        %971 = vmatprep.subr.bf16.mxu0 0
        %972 = vmatpush2.bf16.xpose.msra.mxu0 0
        %973 = vmatprep.subr.bf16.mxu0 0
        %974 = vmatpush2.bf16.xpose.msra.mxu0 0
        %975 = vmatprep.subr.bf16.mxu0 0
        %976 = vmatpush2.bf16.xpose.msra.mxu0 0
        %977 = vmatprep.mubr.bf16.mxu0 0
        %978 = vmatmul.mubr.bf16.gmra.mxu0 %v940
        %v979 = vpop.f32.mrf.mxu0
        %v980 = vadd.f32 %v858, %v979
        %v981 = vpop.f32.mrf.mxu0
        %v982 = vpop.f32.mrf.mxu0
        %v983 = vadd.f32 %v858, %v982
        %v984 = vpop.f32.mrf.mxu0
        %985 = vdwg.mxu0
        %986 = vrot.lane.b32.xlu0 %v931, 96
        %v987 = vpop.permute.xlu0 %986
        %v989 = vsel %vm938, %v931, 0
        %v992 = vsel %vm938, %v987, 0
        %994 = vmatprep.subr.bf16.mxu0 0
        %995 = vmatpush1.bf16.xpose.msra.mxu0 0
        %996 = vmatprep.subr.bf16.mxu0 0
        %997 = vmatpush1.bf16.xpose.msra.mxu0 0
        %998 = vmatprep.subr.bf16.mxu0 0
        %999 = vmatpush1.bf16.xpose.msra.mxu0 0
        %1000 = vmatprep.subr.bf16.mxu0 0
        %1001 = vmatpush1.bf16.xpose.msra.mxu0 0
        %1002 = vmatprep.subr.bf16.mxu0 0
        %1003 = vmatpush1.bf16.xpose.msra.mxu0 0
        %1004 = vmatprep.subr.bf16.mxu0 0
        %1005 = vmatpush1.bf16.xpose.msra.mxu0 0
        %1006 = vmatprep.subr.bf16.mxu0 0
        %1007 = vmatpush1.bf16.xpose.msra.mxu0 0
        %1008 = vmatprep.subr.bf16.mxu0 0
        %1009 = vmatpush1.bf16.xpose.msra.mxu0 %v992
        %1010 = vmatprep.subr.bf16.mxu0 0
        %1011 = vmatpush2.bf16.xpose.msra.mxu0 0
        %1012 = vmatprep.subr.bf16.mxu0 0
        %1013 = vmatpush2.bf16.xpose.msra.mxu0 0
        %1014 = vmatprep.subr.bf16.mxu0 0
        %1015 = vmatpush2.bf16.xpose.msra.mxu0 0
        %1016 = vmatprep.subr.bf16.mxu0 0
        %1017 = vmatpush2.bf16.xpose.msra.mxu0 0
        %1018 = vmatprep.subr.bf16.mxu0 0
        %1019 = vmatpush2.bf16.xpose.msra.mxu0 0
        %1020 = vmatprep.subr.bf16.mxu0 0
        %1021 = vmatpush2.bf16.xpose.msra.mxu0 0
        %1022 = vmatprep.subr.bf16.mxu0 0
        %1023 = vmatpush2.bf16.xpose.msra.mxu0 0
        %1024 = vmatprep.subr.bf16.mxu0 0
        %1025 = vmatpush2.bf16.xpose.msra.mxu0 0
        %1026 = vmatprep.mubr.bf16.mxu0 0
        %1027 = vmatmul.mubr.bf16.gmra.mxu0 %v989
        %v1028 = vpop.f32.mrf.mxu0
        %v1029 = vadd.f32 %v858, %v1028
        %v1030 = vpop.f32.mrf.mxu0
        %v1031 = vpop.f32.mrf.mxu0
        %v1032 = vadd.f32 %v858, %v1031
        %v1033 = vpop.f32.mrf.mxu0
        %1034 = vdwg.mxu0
        %1035 = vrot.lane.b32.xlu0 %v933, 96
        %v1036 = vpop.permute.xlu0 %1035
        %v1038 = vsel %vm938, %v933, 0
        %v1041 = vsel %vm938, %v1036, 0
        %1043 = vmatprep.subr.bf16.mxu0 0
        %1044 = vmatpush1.bf16.xpose.msra.mxu0 0
        %1045 = vmatprep.subr.bf16.mxu0 0
        %1046 = vmatpush1.bf16.xpose.msra.mxu0 0
        %1047 = vmatprep.subr.bf16.mxu0 0
        %1048 = vmatpush1.bf16.xpose.msra.mxu0 0
        %1049 = vmatprep.subr.bf16.mxu0 0
        %1050 = vmatpush1.bf16.xpose.msra.mxu0 0
        %1051 = vmatprep.subr.bf16.mxu0 0
        %1052 = vmatpush1.bf16.xpose.msra.mxu0 0
        %1053 = vmatprep.subr.bf16.mxu0 0
        %1054 = vmatpush1.bf16.xpose.msra.mxu0 0
        %1055 = vmatprep.subr.bf16.mxu0 0
        %1056 = vmatpush1.bf16.xpose.msra.mxu0 0
        %1057 = vmatprep.subr.bf16.mxu0 0
        %1058 = vmatpush1.bf16.xpose.msra.mxu0 %v1041
        %1059 = vmatprep.subr.bf16.mxu0 0
        %1060 = vmatpush2.bf16.xpose.msra.mxu0 0
        %1061 = vmatprep.subr.bf16.mxu0 0
        %1062 = vmatpush2.bf16.xpose.msra.mxu0 0
        %1063 = vmatprep.subr.bf16.mxu0 0
        %1064 = vmatpush2.bf16.xpose.msra.mxu0 0
        %1065 = vmatprep.subr.bf16.mxu0 0
        %1066 = vmatpush2.bf16.xpose.msra.mxu0 0
        %1067 = vmatprep.subr.bf16.mxu0 0
        %1068 = vmatpush2.bf16.xpose.msra.mxu0 0
        %1069 = vmatprep.subr.bf16.mxu0 0
        %1070 = vmatpush2.bf16.xpose.msra.mxu0 0
        %1071 = vmatprep.subr.bf16.mxu0 0
        %1072 = vmatpush2.bf16.xpose.msra.mxu0 0
        %1073 = vmatprep.subr.bf16.mxu0 0
        %1074 = vmatpush2.bf16.xpose.msra.mxu0 0
        %1075 = vmatprep.mubr.bf16.mxu0 0
        %1076 = vmatmul.mubr.bf16.gmra.mxu0 %v1038
        %v1077 = vpop.f32.mrf.mxu0
        %v1078 = vadd.f32 %v858, %v1077
        %v1079 = vpop.f32.mrf.mxu0
        %v1080 = vpop.f32.mrf.mxu0
        %v1081 = vadd.f32 %v858, %v1080
        %v1082 = vpop.f32.mrf.mxu0
        %1083 = vdwg.mxu0
        %1084 = vrot.lane.b32.xlu0 %v935, 96
        %v1085 = vpop.permute.xlu0 %1084
        %v1087 = vsel %vm938, %v935, 0
        %v1090 = vsel %vm938, %v1085, 0
        %1092 = vmatprep.subr.bf16.mxu0 0
        %1093 = vmatpush1.bf16.xpose.msra.mxu0 0
        %1094 = vmatprep.subr.bf16.mxu0 0
        %1095 = vmatpush1.bf16.xpose.msra.mxu0 0
        %1096 = vmatprep.subr.bf16.mxu0 0
        %1097 = vmatpush1.bf16.xpose.msra.mxu0 0
        %1098 = vmatprep.subr.bf16.mxu0 0
        %1099 = vmatpush1.bf16.xpose.msra.mxu0 0
        %1100 = vmatprep.subr.bf16.mxu0 0
        %1101 = vmatpush1.bf16.xpose.msra.mxu0 0
        %1102 = vmatprep.subr.bf16.mxu0 0
        %1103 = vmatpush1.bf16.xpose.msra.mxu0 0
        %1104 = vmatprep.subr.bf16.mxu0 0
        %1105 = vmatpush1.bf16.xpose.msra.mxu0 0
        %1106 = vmatprep.subr.bf16.mxu0 0
        %1107 = vmatpush1.bf16.xpose.msra.mxu0 %v1090
        %1108 = vmatprep.subr.bf16.mxu0 0
        %1109 = vmatpush2.bf16.xpose.msra.mxu0 0
        %1110 = vmatprep.subr.bf16.mxu0 0
        %1111 = vmatpush2.bf16.xpose.msra.mxu0 0
        %1112 = vmatprep.subr.bf16.mxu0 0
        %1113 = vmatpush2.bf16.xpose.msra.mxu0 0
        %1114 = vmatprep.subr.bf16.mxu0 0
        %1115 = vmatpush2.bf16.xpose.msra.mxu0 0
        %1116 = vmatprep.subr.bf16.mxu0 0
        %1117 = vmatpush2.bf16.xpose.msra.mxu0 0
        %1118 = vmatprep.subr.bf16.mxu0 0
        %1119 = vmatpush2.bf16.xpose.msra.mxu0 0
        %1120 = vmatprep.subr.bf16.mxu0 0
        %1121 = vmatpush2.bf16.xpose.msra.mxu0 0
        %1122 = vmatprep.subr.bf16.mxu0 0
        %1123 = vmatpush2.bf16.xpose.msra.mxu0 0
        %1124 = vmatprep.mubr.bf16.mxu0 0
        %1125 = vmatmul.mubr.bf16.gmra.mxu0 %v1087
        %v1126 = vpop.f32.mrf.mxu0
        %v1127 = vadd.f32 %v858, %v1126
        %v1128 = vpop.f32.mrf.mxu0
        %v1129 = vpop.f32.mrf.mxu0
        %v1130 = vadd.f32 %v858, %v1129
        %v1131 = vpop.f32.mrf.mxu0
        %1132 = vdwg.mxu0
        %vm1133 = vcmask 130048
        %v1134 = vsel %vm1133, %v980, -inf
        %1135 = vmax.xlane.f32.xlu0 %v1134
        %v1136 = vpop.xlane.xlu0 %1135
        %v1137 = vsel %vm1133, %v983, -inf
        %1138 = vmax.xlane.f32.xlu0 %v1137
        %v1139 = vpop.xlane.xlu0 %1138
        %v1140 = vsel %vm1133, %v1029, -inf
        %1141 = vmax.xlane.f32.xlu0 %v1140
        %v1142 = vpop.xlane.xlu0 %1141
        %v1143 = vsel %vm1133, %v1032, -inf
        %1144 = vmax.xlane.f32.xlu0 %v1143
        %v1145 = vpop.xlane.xlu0 %1144
        %v1146 = vsel %vm1133, %v1078, -inf
        %1147 = vmax.xlane.f32.xlu0 %v1146
        %v1148 = vpop.xlane.xlu0 %1147
        %v1149 = vsel %vm1133, %v1081, -inf
        %1150 = vmax.xlane.f32.xlu0 %v1149
        %v1151 = vpop.xlane.xlu0 %1150
        %v1152 = vsel %vm1133, %v1127, -inf
        %1153 = vmax.xlane.f32.xlu0 %v1152
        %v1154 = vpop.xlane.xlu0 %1153
        %v1155 = vsel %vm1133, %v1130, -inf
        %1156 = vmax.xlane.f32.xlu0 %v1155
        %v1157 = vpop.xlane.xlu0 %1156
        %v1158 = vsub.f32 %v980, %v1136
        %v1159 = vsub.f32 %v983, %v1139
        %v1160 = vsub.f32 %v1029, %v1142
        %v1161 = vsub.f32 %v1032, %v1145
        %v1162 = vsub.f32 %v1078, %v1148
        %v1163 = vsub.f32 %v1081, %v1151
        %v1164 = vsub.f32 %v1127, %v1154
        %v1165 = vsub.f32 %v1130, %v1157
        %v1166 = vmul.f32 %v1158, 1.442695
        %v1167 = vpow.pop %v1166
        %v1168 = vmul.f32 %v1159, 1.442695
        %v1169 = vpow.pop %v1168
        %v1170 = vmul.f32 %v1160, 1.442695
        %v1171 = vpow.pop %v1170
        %v1172 = vmul.f32 %v1161, 1.442695
        %v1173 = vpow.pop %v1172
        %v1174 = vmul.f32 %v1162, 1.442695
        %v1175 = vpow.pop %v1174
        %v1176 = vmul.f32 %v1163, 1.442695
        %v1177 = vpow.pop %v1176
        %v1178 = vmul.f32 %v1164, 1.442695
        %v1179 = vpow.pop %v1178
        %v1180 = vmul.f32 %v1165, 1.442695
        %v1181 = vpow.pop %v1180
        %v1182 = vsel %vm1133, %v1167, 0.0
        %1183 = vadd.xlane.f32.xlu0 %v1182
        %v1184 = vpop.xlane.xlu0 %1183
        %v1185 = vsel %vm1133, %v1169, 0.0
        %1186 = vadd.xlane.f32.xlu0 %v1185
        %v1187 = vpop.xlane.xlu0 %1186
        %v1188 = vsel %vm1133, %v1171, 0.0
        %1189 = vadd.xlane.f32.xlu0 %v1188
        %v1190 = vpop.xlane.xlu0 %1189
        %v1191 = vsel %vm1133, %v1173, 0.0
        %1192 = vadd.xlane.f32.xlu0 %v1191
        %v1193 = vpop.xlane.xlu0 %1192
        %v1194 = vsel %vm1133, %v1175, 0.0
        %1195 = vadd.xlane.f32.xlu0 %v1194
        %v1196 = vpop.xlane.xlu0 %1195
        %v1197 = vsel %vm1133, %v1177, 0.0
        %1198 = vadd.xlane.f32.xlu0 %v1197
        %v1199 = vpop.xlane.xlu0 %1198
        %v1200 = vsel %vm1133, %v1179, 0.0
        %1201 = vadd.xlane.f32.xlu0 %v1200
        %v1202 = vpop.xlane.xlu0 %1201
        %v1203 = vsel %vm1133, %v1181, 0.0
        %1204 = vadd.xlane.f32.xlu0 %v1203
        %v1205 = vpop.xlane.xlu0 %1204
        %v1206 = vrcp.pop %v1184
        %v1207 = vrcp.pop %v1187
        %v1208 = vrcp.pop %v1190
        %v1209 = vrcp.pop %v1193
        %v1210 = vrcp.pop %v1196
        %v1211 = vrcp.pop %v1199
        %v1212 = vrcp.pop %v1202
        %v1213 = vrcp.pop %v1205
        %v1214 = vmul.f32 %v1167, %v1206
        %v1215 = vmul.f32 %v1169, %v1207
        %v1216 = vmul.f32 %v1171, %v1208
        %v1217 = vmul.f32 %v1173, %v1209
        %v1218 = vmul.f32 %v1175, %v1210
        %v1219 = vmul.f32 %v1177, %v1211
        %v1220 = vmul.f32 %v1179, %v1212
        %v1221 = vmul.f32 %v1181, %v1213
        %v1222 = vpack.c.bf16 %v1215, %v1214
        %v1223 = vpack.c.bf16 %v1217, %v1216
        %v1224 = vpack.c.bf16 %v1219, %v1218
        %v1225 = vpack.c.bf16 %v1221, %v1220
        %1226 = vrot.lane.b32.xlu0 %v928, 64
        %v1227 = vpop.permute.xlu0 %1226
        %v1230 = vsel %vm1133, %v1222, 0
        %1232 = vmatprep.subr.bf16.mxu0 0
        %1233 = vmatpush1.bf16.msra.mxu0 0
        %1234 = vmatprep.subr.bf16.mxu0 0
        %1235 = vmatpush1.bf16.msra.mxu0 0
        %1236 = vmatprep.subr.bf16.mxu0 0
        %1237 = vmatpush1.bf16.msra.mxu0 0
        %1238 = vmatprep.subr.bf16.mxu0 0
        %1239 = vmatpush1.bf16.msra.mxu0 0
        %1240 = vmatprep.subr.bf16.mxu0 0
        %1241 = vmatpush1.bf16.msra.mxu0 0
        %1242 = vmatprep.subr.bf16.mxu0 0
        %1243 = vmatpush1.bf16.msra.mxu0 0
        %1244 = vmatprep.subr.bf16.mxu0 0
        %1245 = vmatpush1.bf16.msra.mxu0 0
        %1246 = vmatprep.subr.bf16.mxu0 0
        %1247 = vmatpush1.bf16.msra.mxu0 %v1227
        %1248 = vmatprep.subr.bf16.mxu0 0
        %1249 = vmatpush2.bf16.msra.mxu0 0
        %1250 = vmatprep.subr.bf16.mxu0 0
        %1251 = vmatpush2.bf16.msra.mxu0 0
        %1252 = vmatprep.subr.bf16.mxu0 0
        %1253 = vmatpush2.bf16.msra.mxu0 0
        %1254 = vmatprep.subr.bf16.mxu0 0
        %1255 = vmatpush2.bf16.msra.mxu0 0
        %1256 = vmatprep.subr.bf16.mxu0 0
        %1257 = vmatpush2.bf16.msra.mxu0 0
        %1258 = vmatprep.subr.bf16.mxu0 0
        %1259 = vmatpush2.bf16.msra.mxu0 0
        %1260 = vmatprep.subr.bf16.mxu0 0
        %1261 = vmatpush2.bf16.msra.mxu0 0
        %1262 = vmatprep.subr.bf16.mxu0 0
        %1263 = vmatpush2.bf16.msra.mxu0 0
        %1264 = vmatprep.mubr.bf16.mxu0 0
        %1265 = vmatmul.mubr.bf16.gmra.mxu0 %v1230
        %v1266 = vpop.f32.mrf.mxu0
        %v1267 = vadd.f32 0.0, %v1266
        %v1268 = vpop.f32.mrf.mxu0
        %v1269 = vpop.f32.mrf.mxu0
        %v1270 = vadd.f32 0.0, %v1269
        %v1271 = vpop.f32.mrf.mxu0
        %1272 = vdwg.mxu0
        %1273 = vrot.lane.b32.xlu0 %v931, 64
        %v1274 = vpop.permute.xlu0 %1273
        %v1277 = vsel %vm1133, %v1223, 0
        %1279 = vmatprep.subr.bf16.mxu0 0
        %1280 = vmatpush1.bf16.msra.mxu0 0
        %1281 = vmatprep.subr.bf16.mxu0 0
        %1282 = vmatpush1.bf16.msra.mxu0 0
        %1283 = vmatprep.subr.bf16.mxu0 0
        %1284 = vmatpush1.bf16.msra.mxu0 0
        %1285 = vmatprep.subr.bf16.mxu0 0
        %1286 = vmatpush1.bf16.msra.mxu0 0
        %1287 = vmatprep.subr.bf16.mxu0 0
        %1288 = vmatpush1.bf16.msra.mxu0 0
        %1289 = vmatprep.subr.bf16.mxu0 0
        %1290 = vmatpush1.bf16.msra.mxu0 0
        %1291 = vmatprep.subr.bf16.mxu0 0
        %1292 = vmatpush1.bf16.msra.mxu0 0
        %1293 = vmatprep.subr.bf16.mxu0 0
        %1294 = vmatpush1.bf16.msra.mxu0 %v1274
        %1295 = vmatprep.subr.bf16.mxu0 0
        %1296 = vmatpush2.bf16.msra.mxu0 0
        %1297 = vmatprep.subr.bf16.mxu0 0
        %1298 = vmatpush2.bf16.msra.mxu0 0
        %1299 = vmatprep.subr.bf16.mxu0 0
        %1300 = vmatpush2.bf16.msra.mxu0 0
        %1301 = vmatprep.subr.bf16.mxu0 0
        %1302 = vmatpush2.bf16.msra.mxu0 0
        %1303 = vmatprep.subr.bf16.mxu0 0
        %1304 = vmatpush2.bf16.msra.mxu0 0
        %1305 = vmatprep.subr.bf16.mxu0 0
        %1306 = vmatpush2.bf16.msra.mxu0 0
        %1307 = vmatprep.subr.bf16.mxu0 0
        %1308 = vmatpush2.bf16.msra.mxu0 0
        %1309 = vmatprep.subr.bf16.mxu0 0
        %1310 = vmatpush2.bf16.msra.mxu0 0
        %1311 = vmatprep.mubr.bf16.mxu0 0
        %1312 = vmatmul.mubr.bf16.gmra.mxu0 %v1277
        %v1313 = vpop.f32.mrf.mxu0
        %v1314 = vadd.f32 0.0, %v1313
        %v1315 = vpop.f32.mrf.mxu0
        %v1316 = vpop.f32.mrf.mxu0
        %v1317 = vadd.f32 0.0, %v1316
        %v1318 = vpop.f32.mrf.mxu0
        %1319 = vdwg.mxu0
        %1320 = vrot.lane.b32.xlu0 %v933, 64
        %v1321 = vpop.permute.xlu0 %1320
        %v1324 = vsel %vm1133, %v1224, 0
        %1326 = vmatprep.subr.bf16.mxu0 0
        %1327 = vmatpush1.bf16.msra.mxu0 0
        %1328 = vmatprep.subr.bf16.mxu0 0
        %1329 = vmatpush1.bf16.msra.mxu0 0
        %1330 = vmatprep.subr.bf16.mxu0 0
        %1331 = vmatpush1.bf16.msra.mxu0 0
        %1332 = vmatprep.subr.bf16.mxu0 0
        %1333 = vmatpush1.bf16.msra.mxu0 0
        %1334 = vmatprep.subr.bf16.mxu0 0
        %1335 = vmatpush1.bf16.msra.mxu0 0
        %1336 = vmatprep.subr.bf16.mxu0 0
        %1337 = vmatpush1.bf16.msra.mxu0 0
        %1338 = vmatprep.subr.bf16.mxu0 0
        %1339 = vmatpush1.bf16.msra.mxu0 0
        %1340 = vmatprep.subr.bf16.mxu0 0
        %1341 = vmatpush1.bf16.msra.mxu0 %v1321
        %1342 = vmatprep.subr.bf16.mxu0 0
        %1343 = vmatpush2.bf16.msra.mxu0 0
        %1344 = vmatprep.subr.bf16.mxu0 0
        %1345 = vmatpush2.bf16.msra.mxu0 0
        %1346 = vmatprep.subr.bf16.mxu0 0
        %1347 = vmatpush2.bf16.msra.mxu0 0
        %1348 = vmatprep.subr.bf16.mxu0 0
        %1349 = vmatpush2.bf16.msra.mxu0 0
        %1350 = vmatprep.subr.bf16.mxu0 0
        %1351 = vmatpush2.bf16.msra.mxu0 0
        %1352 = vmatprep.subr.bf16.mxu0 0
        %1353 = vmatpush2.bf16.msra.mxu0 0
        %1354 = vmatprep.subr.bf16.mxu0 0
        %1355 = vmatpush2.bf16.msra.mxu0 0
        %1356 = vmatprep.subr.bf16.mxu0 0
        %1357 = vmatpush2.bf16.msra.mxu0 0
        %1358 = vmatprep.mubr.bf16.mxu0 0
        %1359 = vmatmul.mubr.bf16.gmra.mxu0 %v1324
        %v1360 = vpop.f32.mrf.mxu0
        %v1361 = vadd.f32 0.0, %v1360
        %v1362 = vpop.f32.mrf.mxu0
        %v1363 = vpop.f32.mrf.mxu0
        %v1364 = vadd.f32 0.0, %v1363
        %v1365 = vpop.f32.mrf.mxu0
        %1366 = vdwg.mxu0
        %1367 = vrot.lane.b32.xlu0 %v935, 64
        %v1368 = vpop.permute.xlu0 %1367
        %v1371 = vsel %vm1133, %v1225, 0
        %1373 = vmatprep.subr.bf16.mxu0 0
        %1374 = vmatpush1.bf16.msra.mxu0 0
        %1375 = vmatprep.subr.bf16.mxu0 0
        %1376 = vmatpush1.bf16.msra.mxu0 0
        %1377 = vmatprep.subr.bf16.mxu0 0
        %1378 = vmatpush1.bf16.msra.mxu0 0
        %1379 = vmatprep.subr.bf16.mxu0 0
        %1380 = vmatpush1.bf16.msra.mxu0 0
        %1381 = vmatprep.subr.bf16.mxu0 0
        %1382 = vmatpush1.bf16.msra.mxu0 0
        %1383 = vmatprep.subr.bf16.mxu0 0
        %1384 = vmatpush1.bf16.msra.mxu0 0
        %1385 = vmatprep.subr.bf16.mxu0 0
        %1386 = vmatpush1.bf16.msra.mxu0 0
        %1387 = vmatprep.subr.bf16.mxu0 0
        %1388 = vmatpush1.bf16.msra.mxu0 %v1368
        %1389 = vmatprep.subr.bf16.mxu0 0
        %1390 = vmatpush2.bf16.msra.mxu0 0
        %1391 = vmatprep.subr.bf16.mxu0 0
        %1392 = vmatpush2.bf16.msra.mxu0 0
        %1393 = vmatprep.subr.bf16.mxu0 0
        %1394 = vmatpush2.bf16.msra.mxu0 0
        %1395 = vmatprep.subr.bf16.mxu0 0
        %1396 = vmatpush2.bf16.msra.mxu0 0
        %1397 = vmatprep.subr.bf16.mxu0 0
        %1398 = vmatpush2.bf16.msra.mxu0 0
        %1399 = vmatprep.subr.bf16.mxu0 0
        %1400 = vmatpush2.bf16.msra.mxu0 0
        %1401 = vmatprep.subr.bf16.mxu0 0
        %1402 = vmatpush2.bf16.msra.mxu0 0
        %1403 = vmatprep.subr.bf16.mxu0 0
        %1404 = vmatpush2.bf16.msra.mxu0 0
        %1405 = vmatprep.mubr.bf16.mxu0 0
        %1406 = vmatmul.mubr.bf16.gmra.mxu0 %v1371
        %v1407 = vpop.f32.mrf.mxu0
        %v1408 = vadd.f32 0.0, %v1407
        %v1409 = vpop.f32.mrf.mxu0
        %v1410 = vpop.f32.mrf.mxu0
        %v1411 = vadd.f32 0.0, %v1410
        %v1412 = vpop.f32.mrf.mxu0
        %1413 = vdwg.mxu0
        %1416 = vrot.lane.b32.xlu0 %v1314, 8
        %v1417 = vpop.permute.xlu0 %1416
        %1418 = vrot.lane.b32.xlu0 %v1317, 8
        %v1419 = vpop.permute.xlu0 %1418
        %1424 = vrot.lane.b32.xlu0 %v1361, 16
        %v1425 = vpop.permute.xlu0 %1424
        %1426 = vrot.lane.b32.xlu0 %v1364, 16
        %v1427 = vpop.permute.xlu0 %1426
        %1432 = vrot.lane.b32.xlu0 %v1408, 24
        %v1433 = vpop.permute.xlu0 %1432
        %1434 = vrot.lane.b32.xlu0 %v1411, 24
        %v1435 = vpop.permute.xlu0 %1434
        %v1438 = vsel %vm938, %v1267, %v1417
        %v1439 = vsel %vm938, %v1270, %v1419
        %v1440 = vsel %vm1133, %v1438, %v1425
        %v1441 = vsel %vm1133, %v1439, %v1427
        %vm1442 = vcmask 195584
        %v1443 = vsel %vm1442, %v1440, %v1433
        %v1444 = vsel %vm1442, %v1441, %v1435
        %v1445 = vpack.c.bf16 %v1444, %v1443
        %v1446 = vld [vmem:[%s746] sm:$0xf]
        %v1447 = vld [vmem:[%s746 + $0x4] sm:$0xf]
        %v1448 = vld [vmem:[%s746 + $0x8] sm:$0xf]
        %v1449 = vld [vmem:[%s746 + $0xc] sm:$0xf]
        %v1450 = vld [vmem:[%s749] sm:$0x1]
        %v1452 = vlaneseq
        %v1453 = vshrl.u32 %v1452, 7
        %v1454 = vsub.s32 0, %v1453
        %v1455 = vrot.slane %v1450, %v1454
        %v1461 = vunpack.c.l.b16 %v1446
        %v1462 = vunpack.c.l.b16 %v1447
        %v1463 = vunpack.c.l.b16 %v1448
        %v1464 = vunpack.c.l.b16 %v1449
        %v1465 = vpack.c.b16 %v1462, %v1461
        %v1466 = vpack.c.b16 %v1464, %v1463
        %v1470 = vsel %vm883, %v1445, 0
        %1472 = vmatprep.subr.bf16.mxu0 0
        %1473 = vmatpush1.bf16.msra.mxu0 0
        %1474 = vmatprep.subr.bf16.mxu0 0
        %1475 = vmatpush1.bf16.msra.mxu0 0
        %1476 = vmatprep.subr.bf16.mxu0 0
        %1477 = vmatpush1.bf16.msra.mxu0 0
        %1478 = vmatprep.subr.bf16.mxu0 0
        %1479 = vmatpush1.bf16.msra.mxu0 0
        %1480 = vmatprep.subr.bf16.mxu0 0
        %1481 = vmatpush1.bf16.msra.mxu0 0
        %1482 = vmatprep.subr.bf16.mxu0 0
        %1483 = vmatpush1.bf16.msra.mxu0 0
        %1484 = vmatprep.subr.bf16.mxu0 0
        %1485 = vmatpush1.bf16.msra.mxu0 %v1466
        %1486 = vmatprep.subr.bf16.mxu0 0
        %1487 = vmatpush1.bf16.msra.mxu0 %v1465
        %1488 = vmatprep.subr.bf16.mxu0 0
        %1489 = vmatpush2.bf16.msra.mxu0 0
        %1490 = vmatprep.subr.bf16.mxu0 0
        %1491 = vmatpush2.bf16.msra.mxu0 0
        %1492 = vmatprep.subr.bf16.mxu0 0
        %1493 = vmatpush2.bf16.msra.mxu0 0
        %1494 = vmatprep.subr.bf16.mxu0 0
        %1495 = vmatpush2.bf16.msra.mxu0 0
        %1496 = vmatprep.subr.bf16.mxu0 0
        %1497 = vmatpush2.bf16.msra.mxu0 0
        %1498 = vmatprep.subr.bf16.mxu0 0
        %1499 = vmatpush2.bf16.msra.mxu0 0
        %1500 = vmatprep.subr.bf16.mxu0 0
        %1501 = vmatpush2.bf16.msra.mxu0 0
        %1502 = vmatprep.subr.bf16.mxu0 0
        %1503 = vmatpush2.bf16.msra.mxu0 0
        %1504 = vmatprep.mubr.bf16.mxu0 0
        %1505 = vmatmul.mubr.bf16.gmra.mxu0 %v1470
        %v1506 = vpop.f32.mrf.mxu0
        %v1507 = vadd.f32 %v1455, %v1506
        %v1508 = vpop.f32.mrf.mxu0
        %v1509 = vpop.f32.mrf.mxu0
        %v1510 = vadd.f32 %v1455, %v1509
        %v1511 = vpop.f32.mrf.mxu0
        %1512 = vdwg.mxu0
        %v1513 = vadd.f32 %v851, %v1507
        %v1514 = vadd.f32 %v852, %v1510
        %v1515 = vld [vmem:[%s752] sm:$0x1]
        %v1516 = vld [vmem:[%s755] sm:$0x1]
        %v1517 = vsel %vm883, %v1513, 0.0
        %1518 = vadd.xlane.f32.xlu0 %v1517
        %v1519 = vpop.xlane.xlu0 %1518
        %v1520 = vsel %vm883, %v1514, 0.0
        %1521 = vadd.xlane.f32.xlu0 %v1520
        %v1522 = vpop.xlane.xlu0 %1521
        %v1523 = vrcp.pop 32.0
        %v1524 = vmul.f32 %v1519, %v1523
        %v1525 = vmul.f32 %v1522, %v1523
        %v1526 = vsub.f32 %v1513, %v1524
        %v1527 = vsub.f32 %v1514, %v1525
        %v1528 = vmul.f32 %v1526, %v1526
        %v1529 = vmul.f32 %v1527, %v1527
        %v1530 = vsel %vm883, %v1528, 0.0
        %1531 = vadd.xlane.f32.xlu0 %v1530
        %v1532 = vpop.xlane.xlu0 %1531
        %v1533 = vsel %vm883, %v1529, 0.0
        %1534 = vadd.xlane.f32.xlu0 %v1533
        %v1535 = vpop.xlane.xlu0 %1534
        %v1536 = vmul.f32 %v1532, %v1523
        %v1537 = vmul.f32 %v1535, %v1523
        %v1538 = vadd.f32 %v1536, 1e-05
        %v1539 = vadd.f32 %v1537, 1e-05
        %v1540 = vrsqrt.pop %v1538
        %v1541 = vrsqrt.pop %v1539
        %v1542 = vmul.f32 %v1526, %v1540
        %v1543 = vmul.f32 %v1527, %v1541
        %v1545 = vlaneseq
        %v1546 = vshrl.u32 %v1545, 7
        %v1547 = vsub.s32 0, %v1546
        %v1548 = vrot.slane %v1515, %v1547
        %v1550 = vmul.f32 %v1542, %v1548
        %v1551 = vmul.f32 %v1543, %v1548
        %v1553 = vlaneseq
        %v1554 = vshrl.u32 %v1553, 7
        %v1555 = vsub.s32 0, %v1554
        %v1556 = vrot.slane %v1516, %v1555
        %v1558 = vadd.f32 %v1550, %v1556
        %v1559 = vadd.f32 %v1551, %v1556
        %v1560 = vpack.c.bf16 %v1559, %v1558
        %v1561 = vld [vmem:[%s760] sm:$0xf]
        %v1562 = vld [vmem:[%s760 + $0x4] sm:$0xf]
        %v1563 = vld [vmem:[%s760 + $0x8] sm:$0xf]
        %v1564 = vld [vmem:[%s760 + $0xc] sm:$0xf]
        %v1565 = vld [vmem:[%s763] sm:$0x1]
        %v1567 = vlaneseq
        %v1568 = vshrl.u32 %v1567, 7
        %v1569 = vsub.s32 0, %v1568
        %v1570 = vrot.slane %v1565, %v1569
        %v1576 = vunpack.c.l.b16 %v1561
        %v1577 = vunpack.c.l.b16 %v1562
        %v1578 = vunpack.c.l.b16 %v1563
        %v1579 = vunpack.c.l.b16 %v1564
        %v1580 = vpack.c.b16 %v1577, %v1576
        %v1581 = vpack.c.b16 %v1579, %v1578
        %v1585 = vsel %vm883, %v1560, 0
        %1587 = vmatprep.subr.bf16.mxu0 0
        %1588 = vmatpush1.bf16.msra.mxu0 0
        %1589 = vmatprep.subr.bf16.mxu0 0
        %1590 = vmatpush1.bf16.msra.mxu0 0
        %1591 = vmatprep.subr.bf16.mxu0 0
        %1592 = vmatpush1.bf16.msra.mxu0 0
        %1593 = vmatprep.subr.bf16.mxu0 0
        %1594 = vmatpush1.bf16.msra.mxu0 0
        %1595 = vmatprep.subr.bf16.mxu0 0
        %1596 = vmatpush1.bf16.msra.mxu0 0
        %1597 = vmatprep.subr.bf16.mxu0 0
        %1598 = vmatpush1.bf16.msra.mxu0 0
        %1599 = vmatprep.subr.bf16.mxu0 0
        %1600 = vmatpush1.bf16.msra.mxu0 %v1581
        %1601 = vmatprep.subr.bf16.mxu0 0
        %1602 = vmatpush1.bf16.msra.mxu0 %v1580
        %1603 = vmatprep.subr.bf16.mxu0 0
        %1604 = vmatpush2.bf16.msra.mxu0 0
        %1605 = vmatprep.subr.bf16.mxu0 0
        %1606 = vmatpush2.bf16.msra.mxu0 0
        %1607 = vmatprep.subr.bf16.mxu0 0
        %1608 = vmatpush2.bf16.msra.mxu0 0
        %1609 = vmatprep.subr.bf16.mxu0 0
        %1610 = vmatpush2.bf16.msra.mxu0 0
        %1611 = vmatprep.subr.bf16.mxu0 0
        %1612 = vmatpush2.bf16.msra.mxu0 0
        %1613 = vmatprep.subr.bf16.mxu0 0
        %1614 = vmatpush2.bf16.msra.mxu0 0
        %1615 = vmatprep.subr.bf16.mxu0 0
        %1616 = vmatpush2.bf16.msra.mxu0 0
        %1617 = vmatprep.subr.bf16.mxu0 0
        %1618 = vmatpush2.bf16.msra.mxu0 0
        %1619 = vmatprep.mubr.bf16.mxu0 0
        %1620 = vmatmul.mubr.bf16.gmra.mxu0 %v1585
        %v1621 = vpop.f32.mrf.mxu0
        %v1622 = vadd.f32 %v1570, %v1621
        %v1623 = vpop.f32.mrf.mxu0
        %v1624 = vpop.f32.mrf.mxu0
        %v1625 = vadd.f32 %v1570, %v1624
        %v1626 = vpop.f32.mrf.mxu0
        %1627 = vdwg.mxu0
        %v1628 = vmax.f32 %v1622, 0.0
        %v1629 = vmax.f32 %v1625, 0.0
        %v1630 = vpack.c.bf16 %v1629, %v1628
        %v1631 = vld [vmem:[%s768] sm:$0xf]
        %v1632 = vld [vmem:[%s768 + $0x4] sm:$0xf]
        %v1633 = vld [vmem:[%s768 + $0x8] sm:$0xf]
        %v1634 = vld [vmem:[%s768 + $0xc] sm:$0xf]
        %v1635 = vld [vmem:[%s768 + $0x10] sm:$0xf]
        %v1636 = vld [vmem:[%s768 + $0x14] sm:$0xf]
        %v1637 = vld [vmem:[%s768 + $0x18] sm:$0xf]
        %v1638 = vld [vmem:[%s768 + $0x1c] sm:$0xf]
        %v1639 = vld [vmem:[%s771] sm:$0x1]
        %v1641 = vlaneseq
        %v1642 = vshrl.u32 %v1641, 7
        %v1643 = vsub.s32 0, %v1642
        %v1644 = vrot.slane %v1639, %v1643
        %v1654 = vunpack.c.l.b16 %v1631
        %v1655 = vunpack.c.l.b16 %v1632
        %v1656 = vunpack.c.l.b16 %v1633
        %v1657 = vunpack.c.l.b16 %v1634
        %v1658 = vunpack.c.l.b16 %v1635
        %v1659 = vunpack.c.l.b16 %v1636
        %v1660 = vunpack.c.l.b16 %v1637
        %v1661 = vunpack.c.l.b16 %v1638
        %v1662 = vpack.c.b16 %v1655, %v1654
        %v1663 = vpack.c.b16 %v1657, %v1656
        %v1664 = vpack.c.b16 %v1659, %v1658
        %v1665 = vpack.c.b16 %v1661, %v1660
        %vm1670 = vcmask 523264
        %v1672 = vsel %vm1670, %v1630, 0
        %1674 = vmatprep.subr.bf16.mxu0 0
        %1675 = vmatpush1.bf16.msra.mxu0 0
        %1676 = vmatprep.subr.bf16.mxu0 0
        %1677 = vmatpush1.bf16.msra.mxu0 0
        %1678 = vmatprep.subr.bf16.mxu0 0
        %1679 = vmatpush1.bf16.msra.mxu0 0
        %1680 = vmatprep.subr.bf16.mxu0 0
        %1681 = vmatpush1.bf16.msra.mxu0 0
        %1682 = vmatprep.subr.bf16.mxu0 0
        %1683 = vmatpush1.bf16.msra.mxu0 %v1665
        %1684 = vmatprep.subr.bf16.mxu0 0
        %1685 = vmatpush1.bf16.msra.mxu0 %v1664
        %1686 = vmatprep.subr.bf16.mxu0 0
        %1687 = vmatpush1.bf16.msra.mxu0 %v1663
        %1688 = vmatprep.subr.bf16.mxu0 0
        %1689 = vmatpush1.bf16.msra.mxu0 %v1662
        %1690 = vmatprep.subr.bf16.mxu0 0
        %1691 = vmatpush2.bf16.msra.mxu0 0
        %1692 = vmatprep.subr.bf16.mxu0 0
        %1693 = vmatpush2.bf16.msra.mxu0 0
        %1694 = vmatprep.subr.bf16.mxu0 0
        %1695 = vmatpush2.bf16.msra.mxu0 0
        %1696 = vmatprep.subr.bf16.mxu0 0
        %1697 = vmatpush2.bf16.msra.mxu0 0
        %1698 = vmatprep.subr.bf16.mxu0 0
        %1699 = vmatpush2.bf16.msra.mxu0 0
        %1700 = vmatprep.subr.bf16.mxu0 0
        %1701 = vmatpush2.bf16.msra.mxu0 0
        %1702 = vmatprep.subr.bf16.mxu0 0
        %1703 = vmatpush2.bf16.msra.mxu0 0
        %1704 = vmatprep.subr.bf16.mxu0 0
        %1705 = vmatpush2.bf16.msra.mxu0 0
        %1706 = vmatprep.mubr.bf16.mxu0 0
        %1707 = vmatmul.mubr.bf16.gmra.mxu0 %v1672
        %v1708 = vpop.f32.mrf.mxu0
        %v1709 = vadd.f32 %v1644, %v1708
        %v1710 = vpop.f32.mrf.mxu0
        %v1711 = vpop.f32.mrf.mxu0
        %v1712 = vadd.f32 %v1644, %v1711
        %v1713 = vpop.f32.mrf.mxu0
        %1714 = vdwg.mxu0
        %v1715 = vadd.f32 %v1558, %v1709
        %v1716 = vadd.f32 %v1559, %v1712
        %v1717 = vld [vmem:[%s774] sm:$0x1]
        %v1718 = vld [vmem:[%s777] sm:$0x1]
        %v1719 = vsel %vm883, %v1715, 0.0
        %1720 = vadd.xlane.f32.xlu0 %v1719
        %v1721 = vpop.xlane.xlu0 %1720
        %v1722 = vsel %vm883, %v1716, 0.0
        %1723 = vadd.xlane.f32.xlu0 %v1722
        %v1724 = vpop.xlane.xlu0 %1723
        %v1725 = vmul.f32 %v1721, %v1523
        %v1726 = vmul.f32 %v1724, %v1523
        %v1727 = vsub.f32 %v1715, %v1725
        %v1728 = vsub.f32 %v1716, %v1726
        %v1729 = vmul.f32 %v1727, %v1727
        %v1730 = vmul.f32 %v1728, %v1728
        %v1731 = vsel %vm883, %v1729, 0.0
        %1732 = vadd.xlane.f32.xlu0 %v1731
        %v1733 = vpop.xlane.xlu0 %1732
        %v1734 = vsel %vm883, %v1730, 0.0
        %1735 = vadd.xlane.f32.xlu0 %v1734
        %v1736 = vpop.xlane.xlu0 %1735
        %v1737 = vmul.f32 %v1733, %v1523
        %v1738 = vmul.f32 %v1736, %v1523
        %v1739 = vadd.f32 %v1737, 1e-05
        %v1740 = vadd.f32 %v1738, 1e-05
        %v1741 = vrsqrt.pop %v1739
        %v1742 = vrsqrt.pop %v1740
        %v1743 = vmul.f32 %v1727, %v1741
        %v1744 = vmul.f32 %v1728, %v1742
        %v1746 = vlaneseq
        %v1747 = vshrl.u32 %v1746, 7
        %v1748 = vsub.s32 0, %v1747
        %v1749 = vrot.slane %v1717, %v1748
        %v1751 = vmul.f32 %v1743, %v1749
        %v1752 = vmul.f32 %v1744, %v1749
        %v1754 = vlaneseq
        %v1755 = vshrl.u32 %v1754, 7
        %v1756 = vsub.s32 0, %v1755
        %v1757 = vrot.slane %v1718, %v1756
        %v1759 = vadd.f32 %v1751, %v1757
        %v1760 = vadd.f32 %v1752, %v1757
        %1761 = vst.msk [vmem:[#allocation2] sm:$0xff] %vm883, %v1759
        %1762 = vst.msk [vmem:[#allocation2 + $0x8] sm:$0xff] %vm883, %v1760
        %vm1763 = vcmask 253952
        %1764 = vst.msk [vmem:[%s733] sm:$0x1] %vm1763, %v1759
        %s1765 = sand.u32 %s456, 1
        %s1766 = scalar_lea.sflag [#allocation5], %s1765
        %s1767 = sand.u32 %s456, 1
        %s1768 = scalar_lea.vmem [#allocation11], %s1767
        // Predicated region
        $region105: #{tpu_custom_call.1} parent=83 // pred_check
          %p1769 = pneg %p466
        $region106: #{tpu_custom_call.1} parent=83 // pred_check_branch
          %1771 = sbr.rel (%p1769) target = $region108
        $region107: #{tpu_custom_call.1} parent=83 // pred_region
          %s1773 = ssub.s32 16, 16
          %1774 = vsyncadd %s1766, %s1773
          %s1775 = smul.addr %s39, 16
          %s1776 = scalar_lea.hbm %s16, %s1775
          %s1778 = sshll.u32 %s1768, 4
          %s1779 = int_to_ptr.vmem [resolvable:$true] %s1778
          %1781 = dma.vmem_to_hbm [thread:$0]  %s1779, 16, %s1776, %s1766
        $region108: #{tpu_custom_call.1} parent=83 // pred_fallthru
          _
      $region84: #{tpu_custom_call.1} parent=5 // pred_fallthru
        _
      %p1782 = scmp.le.s32.totalorder 2, %s30
      // Predicated region
      $region109: #{tpu_custom_call.1} parent=5 // pred_check
        %p1783 = pneg %p1782
      $region110: #{tpu_custom_call.1} parent=5 // pred_check_branch
        %1785 = sbr.rel (%p1783) target = $region112
      $region111: #{tpu_custom_call.1} parent=5 // pred_region
        %s1786 = ssub.s32 %s30, 2
        // Predicated region
        $region113: #{tpu_custom_call.1} parent=111 // pred_check
          %p1787 = pneg %p472
        $region114: #{tpu_custom_call.1} parent=111 // pred_check_branch
          %1789 = sbr.rel (%p1787) target = $region116
        $region115: #{tpu_custom_call.1} parent=111 // pred_region
          %s1790 = sand.u32 %s457, 1
          %s1791 = scalar_lea.sflag [#allocation5], %s1790
          %s1792 = sand.u32 %s457, 1
          %s1793 = scalar_lea.vmem [#allocation11], %s1792
          %1794 = dma.done %s1791, 16
        $region116: #{tpu_custom_call.1} parent=111 // pred_fallthru
          _
      $region112: #{tpu_custom_call.1} parent=5 // pred_fallthru
        _
    $region6: #{tpu_custom_call.1} parent=1 // loop_footer
      %s34 = sadd.s32 1, %s30
    $region7: #{tpu_custom_call.1} parent=1 // loop_footer_branch
      %29 = sbr.rel target = $region3
    $region8: #{tpu_custom_call.1} parent=1 // loop_exit
      _
    %1795 = vsyncpa [#allocation4], 1
    %s1796 = scalar_lea.sflag [#allocation4], 1
    %1797 = vsyncpa %s1796, 1
    %1798 = vsyncpa [#allocation7], 1
    %1799 = vsyncpa [#allocation10], 1
    %1800 = vsyncpa [#allocation5], 1
    %s1801 = scalar_lea.sflag [#allocation5], 1
    %1802 = vsyncpa %s1801, 1

</llo_original>
